<compile_context>
chip_gen: v5e
topology: v5e:2x2
jax: 0.10.0
libtpu: 0.0.40
codegen_flags: <defaults>
</compile_context>

<pallas_src>
import functools

import jax
import jax.numpy as jnp
from jax import lax
from jax.experimental import pallas as pl
from jax.experimental.pallas import tpu as pltpu

HEAD_PAD = 128        # lane-aligned padded width for all regression-head outputs
NEG_SLOPE = 0.01      # nn.LeakyReLU default negative_slope


def _full_spec(shape):
    # whole-array block (grid=(1,)); block dims equal full array dims so the (8,128)
    # divisibility rule is satisfied even for tiny shapes.
    return pl.BlockSpec(shape, lambda i: (0,) * len(shape))


# ----------------------------------------------------------------------------
# Kernel A: fused MLP trunks + all regression heads (single pallas_call)
# ----------------------------------------------------------------------------
def _fused_trunk_heads_kernel(
    glb_ref, loc_ref,
    gw1_ref, gb1_ref, gw2_ref, gb2_ref,
    lw1_ref, lb1_ref, lw2_ref, lb2_ref,
    gh_w_ref, gh_b_ref,          # (H1, 128): [pose 90 | shape 10 | zero pad]
    lh_w_ref, lh_b_ref,          # (H1, 128): [root 6  | cam 3    | zero pad]
    relw_r_ref, relw_l_ref, rel_b_ref,   # (H1, 128) each: [rel 3 | zero pad]
    g_out_ref, l_out_ref, rel_out_ref,
    *, n_right,
):
    def dot_f32(x, w_ref):
        # bf16 operands (native MXU on v6e/v7x), f32 accumulation
        return jnp.dot(x.astype(jnp.bfloat16), w_ref[...],
                       preferred_element_type=jnp.float32)

    def leaky(y):
        return jnp.where(y > 0, y, NEG_SLOPE * y)

    # global trunk: Linear+LeakyReLU x2, intermediates stay on-chip
    g = leaky(dot_f32(glb_ref[...], gw1_ref) + gb1_ref[...])
    g = leaky(dot_f32(g, gw2_ref) + gb2_ref[...])
    # local trunk
    l = leaky(dot_f32(loc_ref[...], lw1_ref) + lb1_ref[...])
    l = leaky(dot_f32(l, lw2_ref) + lb2_ref[...])

    # fused heads, one wide matmul per trunk output (lane-dense 128-wide stores)
    g_out_ref[...] = dot_f32(g, gh_w_ref) + gh_b_ref[...]
    l_out_ref[...] = dot_f32(l, lh_w_ref) + lh_b_ref[...]

    # rel head: einops '(s b) t c -> b t (s c)' expressed as two half matmuls
    l_right = l[:n_right, :]
    l_left = l[n_right:, :]
    rel_out_ref[...] = (dot_f32(l_right, relw_r_ref)
                        + dot_f32(l_left, relw_l_ref)
                        + rel_b_ref[...])


def fused_trunk_heads(glb, loc_flat, p, *, n_right):
    Mg = glb.shape[0]
    Ml = loc_flat.shape[0]
    args = (
        glb.astype(jnp.float32), loc_flat.astype(jnp.float32),
        p["glb_w1"], p["glb_b1"], p["glb_w2"], p["glb_b2"],
        p["loc_w1"], p["loc_b1"], p["loc_w2"], p["loc_b2"],
        p["ghead_w"], p["ghead_b"],
        p["lhead_w"], p["lhead_b"],
        p["rel_w_right"], p["rel_w_left"], p["rel_b"],
    )
    out_shapes = (
        jax.ShapeDtypeStruct((Mg, HEAD_PAD), jnp.float32),
        jax.ShapeDtypeStruct((Ml, HEAD_PAD), jnp.float32),
        jax.ShapeDtypeStruct((n_right, HEAD_PAD), jnp.float32),
    )
    return pl.pallas_call(
        functools.partial(_fused_trunk_heads_kernel, n_right=n_right),
        out_shape=out_shapes,
        grid=(1,),
        in_specs=[_full_spec(a.shape) for a in args],
        out_specs=tuple(_full_spec(s.shape) for s in out_shapes),
        compiler_params=pltpu.CompilerParams(dimension_semantics=("arbitrary",)),
    )(*args)


# ----------------------------------------------------------------------------
# Kernel B: rot6d -> quaternion, lane-dense transposed layout (6, M) -> (4, M)
# ----------------------------------------------------------------------------
def _rot6d_quat_kernel(x_ref, q_ref):
    eps = 1e-12
    eps2 = eps * eps
    a1x, a1y, a1z = x_ref[0:1, :], x_ref[1:2, :], x_ref[2:3, :]
    a2x, a2y, a2z = x_ref[3:4, :], x_ref[4:5, :], x_ref[5:6, :]

    # F.normalize: v / max(||v||, eps)  ==  v * rsqrt(max(||v||^2, eps^2))
    inv_n1 = lax.rsqrt(jnp.maximum(a1x * a1x + a1y * a1y + a1z * a1z, eps2))
    b1x, b1y, b1z = a1x * inv_n1, a1y * inv_n1, a1z * inv_n1
    d = b1x * a2x + b1y * a2y + b1z * a2z
    u2x, u2y, u2z = a2x - d * b1x, a2y - d * b1y, a2z - d * b1z
    inv_n2 = lax.rsqrt(jnp.maximum(u2x * u2x + u2y * u2y + u2z * u2z, eps2))
    b2x, b2y, b2z = u2x * inv_n2, u2y * inv_n2, u2z * inv_n2
    b3x = b1y * b2z - b1z * b2y
    b3y = b1z * b2x - b1x * b2z
    b3z = b1x * b2y - b1y * b2x

    # rotation matrix columns are (b1, b2, b3): R[i, j] = b_{j}[i]
    r00, r01, r02 = b1x, b2x, b3x
    r10, r11, r12 = b1y, b2y, b3y
    r20, r21, r22 = b1z, b2z, b3z

    t0 = 1.0 + r00 - r11 - r22
    t1 = 1.0 - r00 + r11 - r22
    t2 = 1.0 - r00 - r11 + r22
    t3 = 1.0 + r00 + r11 + r22

    q0 = (r21 - r12, t0, r10 + r01, r02 + r20)
    q1 = (r02 - r20, r10 + r01, t1, r21 + r12)
    q2 = (r10 - r01, r02 + r20, r21 + r12, t2)
    q3 = (t3, r21 - r12, r02 - r20, r10 - r01)

    d2 = (r22 < 1e-6).astype(jnp.float32)
    d01 = (r00 > r11).astype(jnp.float32)
    d0n1 = (r00 < -r11).astype(jnp.float32)
    c0 = d2 * d01
    c1 = d2 * (1.0 - d01)
    c2 = (1.0 - d2) * d0n1
    c3 = (1.0 - d2) * (1.0 - d0n1)

    # q = 0.5 * (sum_i q_i c_i) / sqrt(sum_i t_i c_i): single rsqrt hoisted out of the loop
    inv = 0.5 * lax.rsqrt(t0 * c0 + t1 * c1 + t2 * c2 + t3 * c3)
    for comp in range(4):
        qc = (q0[comp] * c0 + q1[comp] * c1 + q2[comp] * c2 + q3[comp] * c3) * inv
        q_ref[comp:comp + 1, :] = qc       # full-lane-width row store (M lanes, unmasked)


def pallas_rot6d_to_quat(x6t):
    """x6t: (6, M) transposed 6D rotation rep -> (4, M) quaternion rows (w, x, y, z)."""
    C, M = x6t.shape
    return pl.pallas_call(
        _rot6d_quat_kernel,
        out_shape=jax.ShapeDtypeStruct((4, M), jnp.float32),
        grid=(1,),
        in_specs=[_full_spec((C, M))],
        out_specs=_full_spec((4, M)),
        compiler_params=pltpu.CompilerParams(dimension_semantics=("arbitrary",)),
    )(x6t.astype(jnp.float32))


# ----------------------------------------------------------------------------
# Kernel C: synthetic MANO linear blend with joint regressor folded into weights
# ----------------------------------------------------------------------------
def _mano_blend_joints_kernel(pose_ref, shape_ref, wp_ref, ws_ref, tmpl_ref, o_ref):
    o_ref[...] = (
        jnp.dot(pose_ref[...].astype(jnp.bfloat16), wp_ref[...],
                preferred_element_type=jnp.float32)
        + jnp.dot(shape_ref[...].astype(jnp.bfloat16), ws_ref[...],
                  preferred_element_type=jnp.float32)
        + tmpl_ref[...]
    )


def pallas_mano_blend_joints(pose, shape, wp, ws, tmpl):
    N = pose.shape[0]
    D = wp.shape[1]
    args = (pose, shape, wp, ws, tmpl)
    return pl.pallas_call(
        _mano_blend_joints_kernel,
        out_shape=jax.ShapeDtypeStruct((N, D), jnp.float32),
        grid=(1,),
        in_specs=[_full_spec(a.shape) for a in args],
        out_specs=_full_spec((N, D)),
        compiler_params=pltpu.CompilerParams(dimension_semantics=("arbitrary",)),
    )(*args)


# ----------------------------------------------------------------------------
# JAX glue (matches torch reference semantics)
# ----------------------------------------------------------------------------
def quat2aa_t(q):
    """q: (4, M) quaternion rows (w,x,y,z) -> (M, 3) axis-angle."""
    # TODO(synk): atan2 kept in plain JAX glue (arctan2 lowering inside Mosaic not guaranteed).
    qw, q1, q2, q3 = q[0], q[1], q[2], q[3]
    ssq = q1 * q1 + q2 * q2 + q3 * q3
    st = jnp.sqrt(ssq)
    two_theta = 2.0 * jnp.where(qw < 0.0, jnp.arctan2(-st, -qw), jnp.arctan2(st, qw))
    k = jnp.where(ssq > 0.0, two_theta / st, 2.0 * jnp.ones_like(st))
    aa = jnp.stack([q1 * k, q2 * k, q3 * k], axis=-1)
    return jnp.where(jnp.isnan(aa), 0.0, aa)   # aa[isnan(aa)] = 0


def init_params(key, feat=128, hidden=(256, 128), num_verts=64, num_joints=21):
    keys = jax.random.split(key, 22)

    def w(k, shape, scale=0.05):
        return (scale * jax.random.normal(k, shape)).astype(jnp.float32)

    h0, h1 = hidden
    return {
        "glb_w1": w(keys[0], (feat, h0)), "glb_b1": w(keys[1], (h0,)),
        "glb_w2": w(keys[2], (h0, h1)),   "glb_b2": w(keys[3], (h1,)),
        "loc_w1": w(keys[4], (feat, h0)), "loc_b1": w(keys[5], (h0,)),
        "loc_w2": w(keys[6], (h0, h1)),   "loc_b2": w(keys[7], (h1,)),
        "pose_w": w(keys[8], (h1, 90)),   "pose_b": w(keys[9], (90,)),
        "root_w": w(keys[10], (h1, 6)),   "root_b": w(keys[11], (6,)),
        "shape_w": w(keys[12], (h1, 10)), "shape_b": w(keys[13], (10,)),
        "cam_w": w(keys[14], (h1, 3)),    "cam_b": w(keys[15], (3,)),
        "rel_w": w(keys[16], (2 * h1, 3)), "rel_b": w(keys[17], (3,)),
        # synthetic MANO layer parameters
        "mano_wp": w(keys[18], (48, num_verts * 3)),
        "mano_ws": w(keys[19], (10, num_verts * 3)),
        "mano_tmpl": w(keys[20], (1, num_verts * 3)),
        "mano_jreg": jnp.abs(w(keys[21], (num_joints, num_verts))),
    }


def prepare_params(raw, *, num_verts=64, num_joints=21):
    """One-time offline re-packing: fuse/pad head weights, fold joint regressor, bf16 cast."""
    h1 = raw["glb_w2"].shape[1]
    wdt = jnp.bfloat16   # MXU-native operand dtype on v6e/v7x (f32 accumulation in-kernel)

    def pad_cols(x, width=HEAD_PAD):
        return jnp.pad(x, ((0, 0), (0, width - x.shape[1])))

    p = {
        "glb_w1": raw["glb_w1"].astype(wdt), "glb_b1": raw["glb_b1"].reshape(1, -1),
        "glb_w2": raw["glb_w2"].astype(wdt), "glb_b2": raw["glb_b2"].reshape(1, -1),
        "loc_w1": raw["loc_w1"].astype(wdt), "loc_b1": raw["loc_b1"].reshape(1, -1),
        "loc_w2": raw["loc_w2"].astype(wdt), "loc_b2": raw["loc_b2"].reshape(1, -1),
    }
    # fused glb heads: [pose(90) | shape(10)] padded to 128 lanes
    p["ghead_w"] = pad_cols(jnp.concatenate([raw["pose_w"], raw["shape_w"]], axis=1)).astype(wdt)
    p["ghead_b"] = pad_cols(jnp.concatenate([raw["pose_b"], raw["shape_b"]])[None, :])
    # fused loc heads: [root(6) | cam(3)] padded to 128 lanes
    p["lhead_w"] = pad_cols(jnp.concatenate([raw["root_w"], raw["cam_w"]], axis=1)).astype(wdt)
    p["lhead_b"] = pad_cols(jnp.concatenate([raw["root_b"], raw["cam_b"]])[None, :])
    # rel head split into right/left halves of the (2*h1, 3) weight
    p["rel_w_right"] = pad_cols(raw["rel_w"][:h1]).astype(wdt)
    p["rel_w_left"] = pad_cols(raw["rel_w"][h1:]).astype(wdt)
    p["rel_b"] = pad_cols(raw["rel_b"][None, :])

    # fold joint regressor into the synthetic MANO blend (everything is linear):
    # joints = Jreg @ verts  ==>  joints_flat = pose @ Wp_j + shape @ Ws_j + tmpl_j
    V, J = num_verts, num_joints
    wp_v, ws_v, tm_v, jreg = raw["mano_wp"], raw["mano_ws"], raw["mano_tmpl"], raw["mano_jreg"]
    wp_j = jnp.einsum("pvd,jv->pjd", wp_v.reshape(-1, V, 3), jreg).reshape(-1, J * 3)
    ws_j = jnp.einsum("svd,jv->sjd", ws_v.reshape(-1, V, 3), jreg).reshape(-1, J * 3)
    tm_j = (jreg @ tm_v.reshape(V, 3)).reshape(1, J * 3)

    blend_pad = (-(V * 3 + J * 3)) % HEAD_PAD

    def pad_blend(x):
        return jnp.pad(x, ((0, 0), (0, blend_pad)))

    p["mano_w_pose"] = pad_blend(jnp.concatenate([wp_v, wp_j], axis=1)).astype(wdt)
    p["mano_w_shape"] = pad_blend(jnp.concatenate([ws_v, ws_j], axis=1)).astype(wdt)
    p["mano_tmpl"] = pad_blend(jnp.concatenate([tm_v, tm_j], axis=1))
    return p


def dynamic_fusion_forward(params, glb_feat, loc_feat, *, num_verts=64, num_joints=21):
    # glb_feat: (2B, F); loc_feat: (2B, T, F) with leading dim packed (s=2 hands, B) -> s*B + b
    B2, T, F = loc_feat.shape
    B = B2 // 2
    n_right = B * T
    N = B2 * T

    # fused trunks + heads (single pallas_call; outputs padded to 128 lanes)
    g_out, l_out, rel_out = fused_trunk_heads(
        glb_feat, loc_feat.reshape(N, F), params, n_right=n_right)

    pose6d_g = g_out[:, 0:90]          # (2B, 90)
    shape_g = g_out[:, 90:100]         # (2B, 10)
    pred_root_6d = l_out[:, 0:6]       # (2B*T, 6)
    pred_cam = l_out[:, 6:9]           # (2B*T, 3)
    pred_rel = rel_out[:, 0:3]         # (B*T, 3)

    # broadcast glb predictions over the sequence
    pred_mano_shape = jnp.broadcast_to(shape_g[:, None, :], (B2, T, 10)).reshape(N, 10)
    pred_hand_pose_6d = jnp.broadcast_to(pose6d_g[:, None, :], (B2, T, 90)).reshape(N, 90)
    pred_mano_pose_6d = jnp.concatenate([pred_root_6d, pred_hand_pose_6d], axis=-1)   # (N, 96)

    # rot6d -> quaternion (lane-dense Pallas kernel), quaternion -> axis-angle (JAX glue)
    x6t = pred_mano_pose_6d.reshape(-1, 6).T            # (6, N*16)
    quat_t = pallas_rot6d_to_quat(x6t)                  # (4, N*16)
    pred_mano_pose = quat2aa_t(quat_t).reshape(N, 48)   # (N, 48)

    # TODO(synk): real MANO articulated LBS layer is an external dependency; replaced here by a
    # deterministic synthetic linear-blend model with the joint regressor folded into the weights.
    out_blend = pallas_mano_blend_joints(
        pred_mano_pose, pred_mano_shape,
        params["mano_w_pose"], params["mano_w_shape"], params["mano_tmpl"])   # (N, padded)
    V, J = num_verts, num_joints
    verts = out_blend[:, :V * 3].reshape(N, V, 3)
    joints = out_blend[:, V * 3:V * 3 + J * 3].reshape(N, J, 3)

    results = {
        "verts3d": verts, "joints3d": joints, "mano_shape": pred_mano_shape,
        "mano_pose": pred_mano_pose, "cam": pred_cam, "mano_pose6d": pred_mano_pose_6d,
    }
    out = {}
    for k, v in results.items():
        bs = v.shape[0]
        v2 = v.reshape((2, bs // 2) + v.shape[1:])
        out[f"{k}_left"] = v2[1]
        out[f"{k}_right"] = v2[0]
    out["root_rel"] = pred_rel

    joints_right, joints_left = out["joints3d_right"], out["joints3d_left"]
    verts_right, verts_left = out["verts3d_right"], out["verts3d_left"]
    root_right = joints_right[:, 9:10, :]
    root_left = joints_left[:, 9:10, :]
    verts_w_right = verts_right - root_right
    verts_w_left = verts_left - root_left
    joints_w_right = joints_right - root_right
    joints_w_left = joints_left - root_left
    verts_w_left = verts_w_left.at[:, :, 0].multiply(-1.0)
    joints_w_left = joints_w_left.at[:, :, 0].multiply(-1.0)
    verts_w_left = verts_w_left + pred_rel[:, None, :]
    joints_w_left = joints_w_left + pred_rel[:, None, :]
    out["joints3d_world_right"] = joints_w_right
    out["verts3d_world_right"] = verts_w_right
    out["joints3d_world_left"] = joints_w_left
    out["verts3d_world_left"] = verts_w_left
    return out


if __name__ == "__main__":
    key = jax.random.PRNGKey(0)
    kp, kg, kl = jax.random.split(key, 3)

    B = 2     # per-hand batch; torch batch dim packs (2 hands, B) -> 2B = 4
    T = 4     # seq_len
    F = 128   # pose_feat_size (small), mano_neurons = [256, 128]
    V, J = 64, 21

    raw = init_params(kp, feat=F, hidden=(256, 128), num_verts=V, num_joints=J)
    params = prepare_params(raw, num_verts=V, num_joints=J)

    glb_feat = jax.random.normal(kg, (2 * B, F), dtype=jnp.float32)
    loc_feat = jax.random.normal(kl, (2 * B, T, F), dtype=jnp.float32)

    fwd = jax.jit(functools.partial(dynamic_fusion_forward, num_verts=V, num_joints=J))
    out = fwd(params, glb_feat, loc_feat)
    out = jax.block_until_ready(out)

    # minimal sanity checks on shapes / finiteness
    assert out["joints3d_right"].shape == (B * T, J, 3)
    assert out["verts3d_world_left"].shape == (B * T, V, 3)
    assert out["mano_pose_left"].shape == (B * T, 48)
    assert out["root_rel"].shape == (B * T, 3)
    assert bool(jnp.all(jnp.isfinite(out["joints3d_world_left"])))
    assert bool(jnp.all(jnp.isfinite(out["verts3d_world_right"])))
    print("KERNEL_OK")
</pallas_src>

<mosaic_0001>
module attributes {stable_mosaic.version = 11 : i64} {
  func.func @_fused_trunk_heads_kernel(%arg0: i32, %arg1: memref<4x128xf32, #tpu.memory_space<vmem>>, %arg2: memref<16x128xf32, #tpu.memory_space<vmem>>, %arg3: memref<128x256xbf16, #tpu.memory_space<vmem>>, %arg4: memref<1x256xf32, #tpu.memory_space<vmem>>, %arg5: memref<256x128xbf16, #tpu.memory_space<vmem>>, %arg6: memref<1x128xf32, #tpu.memory_space<vmem>>, %arg7: memref<128x256xbf16, #tpu.memory_space<vmem>>, %arg8: memref<1x256xf32, #tpu.memory_space<vmem>>, %arg9: memref<256x128xbf16, #tpu.memory_space<vmem>>, %arg10: memref<1x128xf32, #tpu.memory_space<vmem>>, %arg11: memref<128x128xbf16, #tpu.memory_space<vmem>>, %arg12: memref<1x128xf32, #tpu.memory_space<vmem>>, %arg13: memref<128x128xbf16, #tpu.memory_space<vmem>>, %arg14: memref<1x128xf32, #tpu.memory_space<vmem>>, %arg15: memref<128x128xbf16, #tpu.memory_space<vmem>>, %arg16: memref<128x128xbf16, #tpu.memory_space<vmem>>, %arg17: memref<1x128xf32, #tpu.memory_space<vmem>>, %arg18: memref<4x128xf32, #tpu.memory_space<vmem>>, %arg19: memref<16x128xf32, #tpu.memory_space<vmem>>, %arg20: memref<8x128xf32, #tpu.memory_space<vmem>>) attributes {dimension_semantics = [#tpu.dimension_semantics<arbitrary>], iteration_bounds = array<i64: 1>, scalar_prefetch = 0 : i64, scratch_operands = 0 : i64, tpu.core_type = #tpu.core_type<tc>, window_params = [{pipeline_mode = #tpu.pipeline_mode<synchronous>, transform_indices = @transform_0, window_bounds = array<i64: 4, 128>}, {pipeline_mode = #tpu.pipeline_mode<synchronous>, transform_indices = @transform_1, window_bounds = array<i64: 16, 128>}, {pipeline_mode = #tpu.pipeline_mode<synchronous>, transform_indices = @transform_2, window_bounds = array<i64: 128, 256>}, {pipeline_mode = #tpu.pipeline_mode<synchronous>, transform_indices = @transform_3, window_bounds = array<i64: 1, 256>}, {pipeline_mode = #tpu.pipeline_mode<synchronous>, transform_indices = @transform_4, window_bounds = array<i64: 256, 128>}, {pipeline_mode = #tpu.pipeline_mode<synchronous>, transform_indices = @transform_5, window_bounds = array<i64: 1, 128>}, {pipeline_mode = #tpu.pipeline_mode<synchronous>, transform_indices = @transform_6, window_bounds = array<i64: 128, 256>}, {pipeline_mode = #tpu.pipeline_mode<synchronous>, transform_indices = @transform_7, window_bounds = array<i64: 1, 256>}, {pipeline_mode = #tpu.pipeline_mode<synchronous>, transform_indices = @transform_8, window_bounds = array<i64: 256, 128>}, {pipeline_mode = #tpu.pipeline_mode<synchronous>, transform_indices = @transform_9, window_bounds = array<i64: 1, 128>}, {pipeline_mode = #tpu.pipeline_mode<synchronous>, transform_indices = @transform_10, window_bounds = array<i64: 128, 128>}, {pipeline_mode = #tpu.pipeline_mode<synchronous>, transform_indices = @transform_11, window_bounds = array<i64: 1, 128>}, {pipeline_mode = #tpu.pipeline_mode<synchronous>, transform_indices = @transform_12, window_bounds = array<i64: 128, 128>}, {pipeline_mode = #tpu.pipeline_mode<synchronous>, transform_indices = @transform_13, window_bounds = array<i64: 1, 128>}, {pipeline_mode = #tpu.pipeline_mode<synchronous>, transform_indices = @transform_14, window_bounds = array<i64: 128, 128>}, {pipeline_mode = #tpu.pipeline_mode<synchronous>, transform_indices = @transform_15, window_bounds = array<i64: 128, 128>}, {pipeline_mode = #tpu.pipeline_mode<synchronous>, transform_indices = @transform_16, window_bounds = array<i64: 1, 128>}, {pipeline_mode = #tpu.pipeline_mode<synchronous>, transform_indices = @transform_17, window_bounds = array<i64: 4, 128>}, {pipeline_mode = #tpu.pipeline_mode<synchronous>, transform_indices = @transform_18, window_bounds = array<i64: 16, 128>}, {pipeline_mode = #tpu.pipeline_mode<synchronous>, transform_indices = @transform_19, window_bounds = array<i64: 8, 128>}]} {
    %c0 = arith.constant 0 : index
    %c0_0 = arith.constant 0 : index
    %0 = vector.load %arg1[%c0, %c0_0] : memref<4x128xf32, #tpu.memory_space<vmem>>, vector<4x128xf32>
    %1 = arith.truncf %0 : vector<4x128xf32> to vector<4x128xbf16>
    %c0_1 = arith.constant 0 : index
    %c0_2 = arith.constant 0 : index
    %2 = vector.load %arg3[%c0_1, %c0_2] : memref<128x256xbf16, #tpu.memory_space<vmem>>, vector<128x256xbf16>
    %cst = arith.constant dense<0.000000e+00> : vector<4x256xf32>
    %3 = tpu.matmul %1, %2, %cst {dimension_numbers = #tpu.dot_dimension_numbers<[1], [0], [0], [1], [0, 0, 1, 1], [], []>} : vector<4x128xbf16>, vector<128x256xbf16>, vector<4x256xf32> -> vector<4x256xf32>
    %c0_3 = arith.constant 0 : index
    %c0_4 = arith.constant 0 : index
    %4 = vector.load %arg4[%c0_3, %c0_4] : memref<1x256xf32, #tpu.memory_space<vmem>>, vector<1x256xf32>
    %5 = vector.broadcast %4 : vector<1x256xf32> to vector<4x256xf32>
    %6 = arith.addf %3, %5 : vector<4x256xf32>
    %cst_5 = arith.constant 0.000000e+00 : f32
    %7 = vector.broadcast %cst_5 : f32 to vector<4x256xf32>
    %8 = arith.cmpf ogt, %6, %7 : vector<4x256xf32>
    %cst_6 = arith.constant 0.00999999977 : f32
    %9 = vector.broadcast %cst_6 : f32 to vector<4x256xf32>
    %10 = arith.mulf %9, %6 : vector<4x256xf32>
    %11 = arith.select %8, %6, %10 : vector<4x256xi1>, vector<4x256xf32>
    %12 = arith.truncf %11 : vector<4x256xf32> to vector<4x256xbf16>
    %c0_7 = arith.constant 0 : index
    %c0_8 = arith.constant 0 : index
    %13 = vector.load %arg5[%c0_7, %c0_8] : memref<256x128xbf16, #tpu.memory_space<vmem>>, vector<256x128xbf16>
    %cst_9 = arith.constant dense<0.000000e+00> : vector<4x128xf32>
    %14 = tpu.matmul %12, %13, %cst_9 {dimension_numbers = #tpu.dot_dimension_numbers<[1], [0], [0], [1], [0, 0, 1, 1], [], []>} : vector<4x256xbf16>, vector<256x128xbf16>, vector<4x128xf32> -> vector<4x128xf32>
    %c0_10 = arith.constant 0 : index
    %c0_11 = arith.constant 0 : index
    %15 = vector.load %arg6[%c0_10, %c0_11] : memref<1x128xf32, #tpu.memory_space<vmem>>, vector<1x128xf32>
    %16 = vector.broadcast %15 : vector<1x128xf32> to vector<4x128xf32>
    %17 = arith.addf %14, %16 : vector<4x128xf32>
    %cst_12 = arith.constant 0.000000e+00 : f32
    %18 = vector.broadcast %cst_12 : f32 to vector<4x128xf32>
    %19 = arith.cmpf ogt, %17, %18 : vector<4x128xf32>
    %cst_13 = arith.constant 0.00999999977 : f32
    %20 = vector.broadcast %cst_13 : f32 to vector<4x128xf32>
    %21 = arith.mulf %20, %17 : vector<4x128xf32>
    %22 = arith.select %19, %17, %21 : vector<4x128xi1>, vector<4x128xf32>
    %c0_14 = arith.constant 0 : index
    %c0_15 = arith.constant 0 : index
    %23 = vector.load %arg2[%c0_14, %c0_15] : memref<16x128xf32, #tpu.memory_space<vmem>>, vector<16x128xf32>
    %24 = arith.truncf %23 : vector<16x128xf32> to vector<16x128xbf16>
    %c0_16 = arith.constant 0 : index
    %c0_17 = arith.constant 0 : index
    %25 = vector.load %arg7[%c0_16, %c0_17] : memref<128x256xbf16, #tpu.memory_space<vmem>>, vector<128x256xbf16>
    %cst_18 = arith.constant dense<0.000000e+00> : vector<16x256xf32>
    %26 = tpu.matmul %24, %25, %cst_18 {dimension_numbers = #tpu.dot_dimension_numbers<[1], [0], [0], [1], [0, 0, 1, 1], [], []>} : vector<16x128xbf16>, vector<128x256xbf16>, vector<16x256xf32> -> vector<16x256xf32>
    %c0_19 = arith.constant 0 : index
    %c0_20 = arith.constant 0 : index
    %27 = vector.load %arg8[%c0_19, %c0_20] : memref<1x256xf32, #tpu.memory_space<vmem>>, vector<1x256xf32>
    %28 = vector.broadcast %27 : vector<1x256xf32> to vector<16x256xf32>
    %29 = arith.addf %26, %28 : vector<16x256xf32>
    %cst_21 = arith.constant 0.000000e+00 : f32
    %30 = vector.broadcast %cst_21 : f32 to vector<16x256xf32>
    %31 = arith.cmpf ogt, %29, %30 : vector<16x256xf32>
    %cst_22 = arith.constant 0.00999999977 : f32
    %32 = vector.broadcast %cst_22 : f32 to vector<16x256xf32>
    %33 = arith.mulf %32, %29 : vector<16x256xf32>
    %34 = arith.select %31, %29, %33 : vector<16x256xi1>, vector<16x256xf32>
    %35 = arith.truncf %34 : vector<16x256xf32> to vector<16x256xbf16>
    %c0_23 = arith.constant 0 : index
    %c0_24 = arith.constant 0 : index
    %36 = vector.load %arg9[%c0_23, %c0_24] : memref<256x128xbf16, #tpu.memory_space<vmem>>, vector<256x128xbf16>
    %cst_25 = arith.constant dense<0.000000e+00> : vector<16x128xf32>
    %37 = tpu.matmul %35, %36, %cst_25 {dimension_numbers = #tpu.dot_dimension_numbers<[1], [0], [0], [1], [0, 0, 1, 1], [], []>} : vector<16x256xbf16>, vector<256x128xbf16>, vector<16x128xf32> -> vector<16x128xf32>
    %c0_26 = arith.constant 0 : index
    %c0_27 = arith.constant 0 : index
    %38 = vector.load %arg10[%c0_26, %c0_27] : memref<1x128xf32, #tpu.memory_space<vmem>>, vector<1x128xf32>
    %39 = vector.broadcast %38 : vector<1x128xf32> to vector<16x128xf32>
    %40 = arith.addf %37, %39 : vector<16x128xf32>
    %cst_28 = arith.constant 0.000000e+00 : f32
    %41 = vector.broadcast %cst_28 : f32 to vector<16x128xf32>
    %42 = arith.cmpf ogt, %40, %41 : vector<16x128xf32>
    %cst_29 = arith.constant 0.00999999977 : f32
    %43 = vector.broadcast %cst_29 : f32 to vector<16x128xf32>
    %44 = arith.mulf %43, %40 : vector<16x128xf32>
    %45 = arith.select %42, %40, %44 : vector<16x128xi1>, vector<16x128xf32>
    %46 = arith.truncf %22 : vector<4x128xf32> to vector<4x128xbf16>
    %c0_30 = arith.constant 0 : index
    %c0_31 = arith.constant 0 : index
    %47 = vector.load %arg11[%c0_30, %c0_31] : memref<128x128xbf16, #tpu.memory_space<vmem>>, vector<128x128xbf16>
    %cst_32 = arith.constant dense<0.000000e+00> : vector<4x128xf32>
    %48 = tpu.matmul %46, %47, %cst_32 {dimension_numbers = #tpu.dot_dimension_numbers<[1], [0], [0], [1], [0, 0, 1, 1], [], []>} : vector<4x128xbf16>, vector<128x128xbf16>, vector<4x128xf32> -> vector<4x128xf32>
    %c0_33 = arith.constant 0 : index
    %c0_34 = arith.constant 0 : index
    %49 = vector.load %arg12[%c0_33, %c0_34] : memref<1x128xf32, #tpu.memory_space<vmem>>, vector<1x128xf32>
    %50 = vector.broadcast %49 : vector<1x128xf32> to vector<4x128xf32>
    %51 = arith.addf %48, %50 : vector<4x128xf32>
    %c0_35 = arith.constant 0 : index
    %c0_36 = arith.constant 0 : index
    %52 = vector.load %arg18[%c0_35, %c0_36] : memref<4x128xf32, #tpu.memory_space<vmem>>, vector<4x128xf32>
    tpu.vector_store %arg18[%c0_35, %c0_36], %51 {strides = array<i32>} : memref<4x128xf32, #tpu.memory_space<vmem>>, vector<4x128xf32>,
    %53 = arith.truncf %45 : vector<16x128xf32> to vector<16x128xbf16>
    %c0_37 = arith.constant 0 : index
    %c0_38 = arith.constant 0 : index
    %54 = vector.load %arg13[%c0_37, %c0_38] : memref<128x128xbf16, #tpu.memory_space<vmem>>, vector<128x128xbf16>
    %cst_39 = arith.constant dense<0.000000e+00> : vector<16x128xf32>
    %55 = tpu.matmul %53, %54, %cst_39 {dimension_numbers = #tpu.dot_dimension_numbers<[1], [0], [0], [1], [0, 0, 1, 1], [], []>} : vector<16x128xbf16>, vector<128x128xbf16>, vector<16x128xf32> -> vector<16x128xf32>
    %c0_40 = arith.constant 0 : index
    %c0_41 = arith.constant 0 : index
    %56 = vector.load %arg14[%c0_40, %c0_41] : memref<1x128xf32, #tpu.memory_space<vmem>>, vector<1x128xf32>
    %57 = vector.broadcast %56 : vector<1x128xf32> to vector<16x128xf32>
    %58 = arith.addf %55, %57 : vector<16x128xf32>
    %c0_42 = arith.constant 0 : index
    %c0_43 = arith.constant 0 : index
    %59 = vector.load %arg19[%c0_42, %c0_43] : memref<16x128xf32, #tpu.memory_space<vmem>>, vector<16x128xf32>
    tpu.vector_store %arg19[%c0_42, %c0_43], %58 {strides = array<i32>} : memref<16x128xf32, #tpu.memory_space<vmem>>, vector<16x128xf32>,
    %60 = vector.extract_strided_slice %45 {offsets = [0, 0], sizes = [8, 128], strides = [1, 1]} : vector<16x128xf32> to vector<8x128xf32>
    %61 = vector.extract_strided_slice %45 {offsets = [8, 0], sizes = [8, 128], strides = [1, 1]} : vector<16x128xf32> to vector<8x128xf32>
    %62 = arith.truncf %60 : vector<8x128xf32> to vector<8x128xbf16>
    %c0_44 = arith.constant 0 : index
    %c0_45 = arith.constant 0 : index
    %63 = vector.load %arg15[%c0_44, %c0_45] : memref<128x128xbf16, #tpu.memory_space<vmem>>, vector<128x128xbf16>
    %cst_46 = arith.constant dense<0.000000e+00> : vector<8x128xf32>
    %64 = tpu.matmul %62, %63, %cst_46 {dimension_numbers = #tpu.dot_dimension_numbers<[1], [0], [0], [1], [0, 0, 1, 1], [], []>} : vector<8x128xbf16>, vector<128x128xbf16>, vector<8x128xf32> -> vector<8x128xf32>
    %65 = arith.truncf %61 : vector<8x128xf32> to vector<8x128xbf16>
    %c0_47 = arith.constant 0 : index
    %c0_48 = arith.constant 0 : index
    %66 = vector.load %arg16[%c0_47, %c0_48] : memref<128x128xbf16, #tpu.memory_space<vmem>>, vector<128x128xbf16>
    %cst_49 = arith.constant dense<0.000000e+00> : vector<8x128xf32>
    %67 = tpu.matmul %65, %66, %cst_49 {dimension_numbers = #tpu.dot_dimension_numbers<[1], [0], [0], [1], [0, 0, 1, 1], [], []>} : vector<8x128xbf16>, vector<128x128xbf16>, vector<8x128xf32> -> vector<8x128xf32>
    %68 = arith.addf %64, %67 : vector<8x128xf32>
    %c0_50 = arith.constant 0 : index
    %c0_51 = arith.constant 0 : index
    %69 = vector.load %arg17[%c0_50, %c0_51] : memref<1x128xf32, #tpu.memory_space<vmem>>, vector<1x128xf32>
    %70 = vector.broadcast %69 : vector<1x128xf32> to vector<8x128xf32>
    %71 = arith.addf %68, %70 : vector<8x128xf32>
    %c0_52 = arith.constant 0 : index
    %c0_53 = arith.constant 0 : index
    %72 = vector.load %arg20[%c0_52, %c0_53] : memref<8x128xf32, #tpu.memory_space<vmem>>, vector<8x128xf32>
    tpu.vector_store %arg20[%c0_52, %c0_53], %71 {strides = array<i32>} : memref<8x128xf32, #tpu.memory_space<vmem>>, vector<8x128xf32>,
    return
  }
  func.func @transform_0(%arg0: i32) -> (i32, i32) {
    %c0_i32 = arith.constant 0 : i32
    %c0_i32_0 = arith.constant 0 : i32
    %c0_i32_1 = arith.constant 0 : i32
    return %c0_i32, %c0_i32_0 : i32, i32
  }
  func.func @transform_1(%arg0: i32) -> (i32, i32) {
    %c0_i32 = arith.constant 0 : i32
    %c0_i32_0 = arith.constant 0 : i32
    %c0_i32_1 = arith.constant 0 : i32
    return %c0_i32, %c0_i32_0 : i32, i32
  }
  func.func @transform_2(%arg0: i32) -> (i32, i32) {
    %c0_i32 = arith.constant 0 : i32
    %c0_i32_0 = arith.constant 0 : i32
    %c0_i32_1 = arith.constant 0 : i32
    return %c0_i32, %c0_i32_0 : i32, i32
  }
  func.func @transform_3(%arg0: i32) -> (i32, i32) {
    %c0_i32 = arith.constant 0 : i32
    %c0_i32_0 = arith.constant 0 : i32
    %c0_i32_1 = arith.constant 0 : i32
    return %c0_i32, %c0_i32_0 : i32, i32
  }
  func.func @transform_4(%arg0: i32) -> (i32, i32) {
    %c0_i32 = arith.constant 0 : i32
    %c0_i32_0 = arith.constant 0 : i32
    %c0_i32_1 = arith.constant 0 : i32
    return %c0_i32, %c0_i32_0 : i32, i32
  }
  func.func @transform_5(%arg0: i32) -> (i32, i32) {
    %c0_i32 = arith.constant 0 : i32
    %c0_i32_0 = arith.constant 0 : i32
    %c0_i32_1 = arith.constant 0 : i32
    return %c0_i32, %c0_i32_0 : i32, i32
  }
  func.func @transform_6(%arg0: i32) -> (i32, i32) {
    %c0_i32 = arith.constant 0 : i32
    %c0_i32_0 = arith.constant 0 : i32
    %c0_i32_1 = arith.constant 0 : i32
    return %c0_i32, %c0_i32_0 : i32, i32
  }
  func.func @transform_7(%arg0: i32) -> (i32, i32) {
    %c0_i32 = arith.constant 0 : i32
    %c0_i32_0 = arith.constant 0 : i32
    %c0_i32_1 = arith.constant 0 : i32
    return %c0_i32, %c0_i32_0 : i32, i32
  }
  func.func @transform_8(%arg0: i32) -> (i32, i32) {
    %c0_i32 = arith.constant 0 : i32
    %c0_i32_0 = arith.constant 0 : i32
    %c0_i32_1 = arith.constant 0 : i32
    return %c0_i32, %c0_i32_0 : i32, i32
  }
  func.func @transform_9(%arg0: i32) -> (i32, i32) {
    %c0_i32 = arith.constant 0 : i32
    %c0_i32_0 = arith.constant 0 : i32
    %c0_i32_1 = arith.constant 0 : i32
    return %c0_i32, %c0_i32_0 : i32, i32
  }
  func.func @transform_10(%arg0: i32) -> (i32, i32) {
    %c0_i32 = arith.constant 0 : i32
    %c0_i32_0 = arith.constant 0 : i32
    %c0_i32_1 = arith.constant 0 : i32
    return %c0_i32, %c0_i32_0 : i32, i32
  }
  func.func @transform_11(%arg0: i32) -> (i32, i32) {
    %c0_i32 = arith.constant 0 : i32
    %c0_i32_0 = arith.constant 0 : i32
    %c0_i32_1 = arith.constant 0 : i32
    return %c0_i32, %c0_i32_0 : i32, i32
  }
  func.func @transform_12(%arg0: i32) -> (i32, i32) {
    %c0_i32 = arith.constant 0 : i32
    %c0_i32_0 = arith.constant 0 : i32
    %c0_i32_1 = arith.constant 0 : i32
    return %c0_i32, %c0_i32_0 : i32, i32
  }
  func.func @transform_13(%arg0: i32) -> (i32, i32) {
    %c0_i32 = arith.constant 0 : i32
    %c0_i32_0 = arith.constant 0 : i32
    %c0_i32_1 = arith.constant 0 : i32
    return %c0_i32, %c0_i32_0 : i32, i32
  }
  func.func @transform_14(%arg0: i32) -> (i32, i32) {
    %c0_i32 = arith.constant 0 : i32
    %c0_i32_0 = arith.constant 0 : i32
    %c0_i32_1 = arith.constant 0 : i32
    return %c0_i32, %c0_i32_0 : i32, i32
  }
  func.func @transform_15(%arg0: i32) -> (i32, i32) {
    %c0_i32 = arith.constant 0 : i32
    %c0_i32_0 = arith.constant 0 : i32
    %c0_i32_1 = arith.constant 0 : i32
    return %c0_i32, %c0_i32_0 : i32, i32
  }
  func.func @transform_16(%arg0: i32) -> (i32, i32) {
    %c0_i32 = arith.constant 0 : i32
    %c0_i32_0 = arith.constant 0 : i32
    %c0_i32_1 = arith.constant 0 : i32
    return %c0_i32, %c0_i32_0 : i32, i32
  }
  func.func @transform_17(%arg0: i32) -> (i32, i32) {
    %c0_i32 = arith.constant 0 : i32
    %c0_i32_0 = arith.constant 0 : i32
    %c0_i32_1 = arith.constant 0 : i32
    return %c0_i32, %c0_i32_0 : i32, i32
  }
  func.func @transform_18(%arg0: i32) -> (i32, i32) {
    %c0_i32 = arith.constant 0 : i32
    %c0_i32_0 = arith.constant 0 : i32
    %c0_i32_1 = arith.constant 0 : i32
    return %c0_i32, %c0_i32_0 : i32, i32
  }
  func.func @transform_19(%arg0: i32) -> (i32, i32) {
    %c0_i32 = arith.constant 0 : i32
    %c0_i32_0 = arith.constant 0 : i32
    %c0_i32_1 = arith.constant 0 : i32
    return %c0_i32, %c0_i32_0 : i32, i32
  }
}

module attributes {stable_mosaic.version = 11 : i64} {
  func.func @_rot6d_quat_kernel(%arg0: i32, %arg1: memref<6x256xf32, #tpu.memory_space<vmem>>, %arg2: memref<4x256xf32, #tpu.memory_space<vmem>>) attributes {dimension_semantics = [#tpu.dimension_semantics<arbitrary>], iteration_bounds = array<i64: 1>, scalar_prefetch = 0 : i64, scratch_operands = 0 : i64, tpu.core_type = #tpu.core_type<tc>, window_params = [{pipeline_mode = #tpu.pipeline_mode<synchronous>, transform_indices = @transform_0, window_bounds = array<i64: 6, 256>}, {pipeline_mode = #tpu.pipeline_mode<synchronous>, transform_indices = @transform_1, window_bounds = array<i64: 4, 256>}]} {
    %c0 = arith.constant 0 : index
    %c0_0 = arith.constant 0 : index
    %0 = vector.load %arg1[%c0, %c0_0] : memref<6x256xf32, #tpu.memory_space<vmem>>, vector<1x256xf32>
    %c1 = arith.constant 1 : index
    %c0_1 = arith.constant 0 : index
    %1 = vector.load %arg1[%c1, %c0_1] : memref<6x256xf32, #tpu.memory_space<vmem>>, vector<1x256xf32>
    %c2 = arith.constant 2 : index
    %c0_2 = arith.constant 0 : index
    %2 = vector.load %arg1[%c2, %c0_2] : memref<6x256xf32, #tpu.memory_space<vmem>>, vector<1x256xf32>
    %c3 = arith.constant 3 : index
    %c0_3 = arith.constant 0 : index
    %3 = vector.load %arg1[%c3, %c0_3] : memref<6x256xf32, #tpu.memory_space<vmem>>, vector<1x256xf32>
    %c4 = arith.constant 4 : index
    %c0_4 = arith.constant 0 : index
    %4 = vector.load %arg1[%c4, %c0_4] : memref<6x256xf32, #tpu.memory_space<vmem>>, vector<1x256xf32>
    %c5 = arith.constant 5 : index
    %c0_5 = arith.constant 0 : index
    %5 = vector.load %arg1[%c5, %c0_5] : memref<6x256xf32, #tpu.memory_space<vmem>>, vector<1x256xf32>
    %6 = arith.mulf %0, %0 : vector<1x256xf32>
    %7 = arith.mulf %1, %1 : vector<1x256xf32>
    %8 = arith.addf %6, %7 : vector<1x256xf32>
    %9 = arith.mulf %2, %2 : vector<1x256xf32>
    %10 = arith.addf %8, %9 : vector<1x256xf32>
    %cst = arith.constant 1.000000e-24 : f32
    %11 = vector.broadcast %cst : f32 to vector<1x256xf32>
    %12 = arith.maximumf %10, %11 : vector<1x256xf32>
    %13 = math.rsqrt %12 : vector<1x256xf32>
    %14 = arith.mulf %0, %13 : vector<1x256xf32>
    %15 = arith.mulf %1, %13 : vector<1x256xf32>
    %16 = arith.mulf %2, %13 : vector<1x256xf32>
    %17 = arith.mulf %14, %3 : vector<1x256xf32>
    %18 = arith.mulf %15, %4 : vector<1x256xf32>
    %19 = arith.addf %17, %18 : vector<1x256xf32>
    %20 = arith.mulf %16, %5 : vector<1x256xf32>
    %21 = arith.addf %19, %20 : vector<1x256xf32>
    %22 = arith.mulf %21, %14 : vector<1x256xf32>
    %23 = arith.subf %3, %22 : vector<1x256xf32>
    %24 = arith.mulf %21, %15 : vector<1x256xf32>
    %25 = arith.subf %4, %24 : vector<1x256xf32>
    %26 = arith.mulf %21, %16 : vector<1x256xf32>
    %27 = arith.subf %5, %26 : vector<1x256xf32>
    %28 = arith.mulf %23, %23 : vector<1x256xf32>
    %29 = arith.mulf %25, %25 : vector<1x256xf32>
    %30 = arith.addf %28, %29 : vector<1x256xf32>
    %31 = arith.mulf %27, %27 : vector<1x256xf32>
    %32 = arith.addf %30, %31 : vector<1x256xf32>
    %cst_6 = arith.constant 1.000000e-24 : f32
    %33 = vector.broadcast %cst_6 : f32 to vector<1x256xf32>
    %34 = arith.maximumf %32, %33 : vector<1x256xf32>
    %35 = math.rsqrt %34 : vector<1x256xf32>
    %36 = arith.mulf %23, %35 : vector<1x256xf32>
    %37 = arith.mulf %25, %35 : vector<1x256xf32>
    %38 = arith.mulf %27, %35 : vector<1x256xf32>
    %39 = arith.mulf %15, %38 : vector<1x256xf32>
    %40 = arith.mulf %16, %37 : vector<1x256xf32>
    %41 = arith.subf %39, %40 : vector<1x256xf32>
    %42 = arith.mulf %16, %36 : vector<1x256xf32>
    %43 = arith.mulf %14, %38 : vector<1x256xf32>
    %44 = arith.subf %42, %43 : vector<1x256xf32>
    %45 = arith.mulf %14, %37 : vector<1x256xf32>
    %46 = arith.mulf %15, %36 : vector<1x256xf32>
    %47 = arith.subf %45, %46 : vector<1x256xf32>
    %cst_7 = arith.constant 1.000000e+00 : f32
    %48 = vector.broadcast %cst_7 : f32 to vector<1x256xf32>
    %49 = arith.addf %48, %14 : vector<1x256xf32>
    %50 = arith.subf %49, %37 : vector<1x256xf32>
    %51 = arith.subf %50, %47 : vector<1x256xf32>
    %cst_8 = arith.constant 1.000000e+00 : f32
    %52 = vector.broadcast %cst_8 : f32 to vector<1x256xf32>
    %53 = arith.subf %52, %14 : vector<1x256xf32>
    %54 = arith.addf %53, %37 : vector<1x256xf32>
    %55 = arith.subf %54, %47 : vector<1x256xf32>
    %cst_9 = arith.constant 1.000000e+00 : f32
    %56 = vector.broadcast %cst_9 : f32 to vector<1x256xf32>
    %57 = arith.subf %56, %14 : vector<1x256xf32>
    %58 = arith.subf %57, %37 : vector<1x256xf32>
    %59 = arith.addf %58, %47 : vector<1x256xf32>
    %cst_10 = arith.constant 1.000000e+00 : f32
    %60 = vector.broadcast %cst_10 : f32 to vector<1x256xf32>
    %61 = arith.addf %60, %14 : vector<1x256xf32>
    %62 = arith.addf %61, %37 : vector<1x256xf32>
    %63 = arith.addf %62, %47 : vector<1x256xf32>
    %64 = arith.subf %38, %44 : vector<1x256xf32>
    %65 = arith.addf %15, %36 : vector<1x256xf32>
    %66 = arith.addf %41, %16 : vector<1x256xf32>
    %67 = arith.subf %41, %16 : vector<1x256xf32>
    %68 = arith.addf %15, %36 : vector<1x256xf32>
    %69 = arith.addf %38, %44 : vector<1x256xf32>
    %70 = arith.subf %15, %36 : vector<1x256xf32>
    %71 = arith.addf %41, %16 : vector<1x256xf32>
    %72 = arith.addf %38, %44 : vector<1x256xf32>
    %73 = arith.subf %38, %44 : vector<1x256xf32>
    %74 = arith.subf %41, %16 : vector<1x256xf32>
    %75 = arith.subf %15, %36 : vector<1x256xf32>
    %cst_11 = arith.constant 9.99999997E-7 : f32
    %76 = vector.broadcast %cst_11 : f32 to vector<1x256xf32>
    %77 = arith.cmpf olt, %47, %76 : vector<1x256xf32>
    %78 = arith.extui %77 : vector<1x256xi1> to vector<1x256xi32>
    %79 = arith.sitofp %78 : vector<1x256xi32> to vector<1x256xf32>
    %80 = arith.cmpf ogt, %14, %37 : vector<1x256xf32>
    %81 = arith.extui %80 : vector<1x256xi1> to vector<1x256xi32>
    %82 = arith.sitofp %81 : vector<1x256xi32> to vector<1x256xf32>
    %cst_12 = arith.constant 0.000000e+00 : f32
    %83 = vector.broadcast %cst_12 : f32 to vector<1x256xf32>
    %84 = arith.subf %83, %37 : vector<1x256xf32>
    %85 = arith.cmpf olt, %14, %84 : vector<1x256xf32>
    %86 = arith.extui %85 : vector<1x256xi1> to vector<1x256xi32>
    %87 = arith.sitofp %86 : vector<1x256xi32> to vector<1x256xf32>
    %88 = arith.mulf %79, %82 : vector<1x256xf32>
    %cst_13 = arith.constant 1.000000e+00 : f32
    %89 = vector.broadcast %cst_13 : f32 to vector<1x256xf32>
    %90 = arith.subf %89, %82 : vector<1x256xf32>
    %91 = arith.mulf %79, %90 : vector<1x256xf32>
    %cst_14 = arith.constant 1.000000e+00 : f32
    %92 = vector.broadcast %cst_14 : f32 to vector<1x256xf32>
    %93 = arith.subf %92, %79 : vector<1x256xf32>
    %94 = arith.mulf %93, %87 : vector<1x256xf32>
    %cst_15 = arith.constant 1.000000e+00 : f32
    %95 = vector.broadcast %cst_15 : f32 to vector<1x256xf32>
    %96 = arith.subf %95, %79 : vector<1x256xf32>
    %cst_16 = arith.constant 1.000000e+00 : f32
    %97 = vector.broadcast %cst_16 : f32 to vector<1x256xf32>
    %98 = arith.subf %97, %87 : vector<1x256xf32>
    %99 = arith.mulf %96, %98 : vector<1x256xf32>
    %100 = arith.mulf %51, %88 : vector<1x256xf32>
    %101 = arith.mulf %55, %91 : vector<1x256xf32>
    %102 = arith.addf %100, %101 : vector<1x256xf32>
    %103 = arith.mulf %59, %94 : vector<1x256xf32>
    %104 = arith.addf %102, %103 : vector<1x256xf32>
    %105 = arith.mulf %63, %99 : vector<1x256xf32>
    %106 = arith.addf %104, %105 : vector<1x256xf32>
    %107 = math.rsqrt %106 : vector<1x256xf32>
    %cst_17 = arith.constant 5.000000e-01 : f32
    %108 = vector.broadcast %cst_17 : f32 to vector<1x256xf32>
    %109 = arith.mulf %108, %107 : vector<1x256xf32>
    %110 = arith.mulf %64, %88 : vector<1x256xf32>
    %111 = arith.mulf %67, %91 : vector<1x256xf32>
    %112 = arith.addf %110, %111 : vector<1x256xf32>
    %113 = arith.mulf %70, %94 : vector<1x256xf32>
    %114 = arith.addf %112, %113 : vector<1x256xf32>
    %115 = arith.mulf %63, %99 : vector<1x256xf32>
    %116 = arith.addf %114, %115 : vector<1x256xf32>
    %117 = arith.mulf %116, %109 : vector<1x256xf32>
    %c0_18 = arith.constant 0 : index
    %c0_19 = arith.constant 0 : index
    %118 = vector.load %arg2[%c0_18, %c0_19] : memref<4x256xf32, #tpu.memory_space<vmem>>, vector<1x256xf32>
    tpu.vector_store %arg2[%c0_18, %c0_19], %117 {strides = array<i32>} : memref<4x256xf32, #tpu.memory_space<vmem>>, vector<1x256xf32>,
    %119 = arith.mulf %51, %88 : vector<1x256xf32>
    %120 = arith.mulf %68, %91 : vector<1x256xf32>
    %121 = arith.addf %119, %120 : vector<1x256xf32>
    %122 = arith.mulf %71, %94 : vector<1x256xf32>
    %123 = arith.addf %121, %122 : vector<1x256xf32>
    %124 = arith.mulf %73, %99 : vector<1x256xf32>
    %125 = arith.addf %123, %124 : vector<1x256xf32>
    %126 = arith.mulf %125, %109 : vector<1x256xf32>
    %c1_20 = arith.constant 1 : index
    %c0_21 = arith.constant 0 : index
    %127 = vector.load %arg2[%c1_20, %c0_21] : memref<4x256xf32, #tpu.memory_space<vmem>>, vector<1x256xf32>
    tpu.vector_store %arg2[%c1_20, %c0_21], %126 {strides = array<i32>} : memref<4x256xf32, #tpu.memory_space<vmem>>, vector<1x256xf32>,
    %128 = arith.mulf %65, %88 : vector<1x256xf32>
    %129 = arith.mulf %55, %91 : vector<1x256xf32>
    %130 = arith.addf %128, %129 : vector<1x256xf32>
    %131 = arith.mulf %72, %94 : vector<1x256xf32>
    %132 = arith.addf %130, %131 : vector<1x256xf32>
    %133 = arith.mulf %74, %99 : vector<1x256xf32>
    %134 = arith.addf %132, %133 : vector<1x256xf32>
    %135 = arith.mulf %134, %109 : vector<1x256xf32>
    %c2_22 = arith.constant 2 : index
    %c0_23 = arith.constant 0 : index
    %136 = vector.load %arg2[%c2_22, %c0_23] : memref<4x256xf32, #tpu.memory_space<vmem>>, vector<1x256xf32>
    tpu.vector_store %arg2[%c2_22, %c0_23], %135 {strides = array<i32>} : memref<4x256xf32, #tpu.memory_space<vmem>>, vector<1x256xf32>,
    %137 = arith.mulf %66, %88 : vector<1x256xf32>
    %138 = arith.mulf %69, %91 : vector<1x256xf32>
    %139 = arith.addf %137, %138 : vector<1x256xf32>
    %140 = arith.mulf %59, %94 : vector<1x256xf32>
    %141 = arith.addf %139, %140 : vector<1x256xf32>
    %142 = arith.mulf %75, %99 : vector<1x256xf32>
    %143 = arith.addf %141, %142 : vector<1x256xf32>
    %144 = arith.mulf %143, %109 : vector<1x256xf32>
    %c3_24 = arith.constant 3 : index
    %c0_25 = arith.constant 0 : index
    %145 = vector.load %arg2[%c3_24, %c0_25] : memref<4x256xf32, #tpu.memory_space<vmem>>, vector<1x256xf32>
    tpu.vector_store %arg2[%c3_24, %c0_25], %144 {strides = array<i32>} : memref<4x256xf32, #tpu.memory_space<vmem>>, vector<1x256xf32>,
    return
  }
  func.func @transform_0(%arg0: i32) -> (i32, i32) {
    %c0_i32 = arith.constant 0 : i32
    %c0_i32_0 = arith.constant 0 : i32
    %c0_i32_1 = arith.constant 0 : i32
    return %c0_i32, %c0_i32_0 : i32, i32
  }
  func.func @transform_1(%arg0: i32) -> (i32, i32) {
    %c0_i32 = arith.constant 0 : i32
    %c0_i32_0 = arith.constant 0 : i32
    %c0_i32_1 = arith.constant 0 : i32
    return %c0_i32, %c0_i32_0 : i32, i32
  }
}

module attributes {stable_mosaic.version = 11 : i64} {
  func.func @_mano_blend_joints_kernel(%arg0: i32, %arg1: memref<16x48xf32, #tpu.memory_space<vmem>>, %arg2: memref<16x10xf32, #tpu.memory_space<vmem>>, %arg3: memref<48x256xbf16, #tpu.memory_space<vmem>>, %arg4: memref<10x256xbf16, #tpu.memory_space<vmem>>, %arg5: memref<1x256xf32, #tpu.memory_space<vmem>>, %arg6: memref<16x256xf32, #tpu.memory_space<vmem>>) attributes {dimension_semantics = [#tpu.dimension_semantics<arbitrary>], iteration_bounds = array<i64: 1>, scalar_prefetch = 0 : i64, scratch_operands = 0 : i64, tpu.core_type = #tpu.core_type<tc>, window_params = [{pipeline_mode = #tpu.pipeline_mode<synchronous>, transform_indices = @transform_0, window_bounds = array<i64: 16, 48>}, {pipeline_mode = #tpu.pipeline_mode<synchronous>, transform_indices = @transform_1, window_bounds = array<i64: 16, 10>}, {pipeline_mode = #tpu.pipeline_mode<synchronous>, transform_indices = @transform_2, window_bounds = array<i64: 48, 256>}, {pipeline_mode = #tpu.pipeline_mode<synchronous>, transform_indices = @transform_3, window_bounds = array<i64: 10, 256>}, {pipeline_mode = #tpu.pipeline_mode<synchronous>, transform_indices = @transform_4, window_bounds = array<i64: 1, 256>}, {pipeline_mode = #tpu.pipeline_mode<synchronous>, transform_indices = @transform_5, window_bounds = array<i64: 16, 256>}]} {
    %c0 = arith.constant 0 : index
    %c0_0 = arith.constant 0 : index
    %0 = vector.load %arg1[%c0, %c0_0] : memref<16x48xf32, #tpu.memory_space<vmem>>, vector<16x48xf32>
    %1 = arith.truncf %0 : vector<16x48xf32> to vector<16x48xbf16>
    %c0_1 = arith.constant 0 : index
    %c0_2 = arith.constant 0 : index
    %2 = vector.load %arg3[%c0_1, %c0_2] : memref<48x256xbf16, #tpu.memory_space<vmem>>, vector<48x256xbf16>
    %cst = arith.constant dense<0.000000e+00> : vector<16x256xf32>
    %3 = tpu.matmul %1, %2, %cst {dimension_numbers = #tpu.dot_dimension_numbers<[1], [0], [0], [1], [0, 0, 1, 1], [], []>} : vector<16x48xbf16>, vector<48x256xbf16>, vector<16x256xf32> -> vector<16x256xf32>
    %c0_3 = arith.constant 0 : index
    %c0_4 = arith.constant 0 : index
    %4 = vector.load %arg2[%c0_3, %c0_4] : memref<16x10xf32, #tpu.memory_space<vmem>>, vector<16x10xf32>
    %5 = arith.truncf %4 : vector<16x10xf32> to vector<16x10xbf16>
    %c0_5 = arith.constant 0 : index
    %c0_6 = arith.constant 0 : index
    %6 = vector.load %arg4[%c0_5, %c0_6] : memref<10x256xbf16, #tpu.memory_space<vmem>>, vector<10x256xbf16>
    %cst_7 = arith.constant dense<0.000000e+00> : vector<16x256xf32>
    %7 = tpu.matmul %5, %6, %cst_7 {dimension_numbers = #tpu.dot_dimension_numbers<[1], [0], [0], [1], [0, 0, 1, 1], [], []>} : vector<16x10xbf16>, vector<10x256xbf16>, vector<16x256xf32> -> vector<16x256xf32>
    %8 = arith.addf %3, %7 : vector<16x256xf32>
    %c0_8 = arith.constant 0 : index
    %c0_9 = arith.constant 0 : index
    %9 = vector.load %arg5[%c0_8, %c0_9] : memref<1x256xf32, #tpu.memory_space<vmem>>, vector<1x256xf32>
    %10 = vector.broadcast %9 : vector<1x256xf32> to vector<16x256xf32>
    %11 = arith.addf %8, %10 : vector<16x256xf32>
    %c0_10 = arith.constant 0 : index
    %c0_11 = arith.constant 0 : index
    %12 = vector.load %arg6[%c0_10, %c0_11] : memref<16x256xf32, #tpu.memory_space<vmem>>, vector<16x256xf32>
    tpu.vector_store %arg6[%c0_10, %c0_11], %11 {strides = array<i32>} : memref<16x256xf32, #tpu.memory_space<vmem>>, vector<16x256xf32>,
    return
  }
  func.func @transform_0(%arg0: i32) -> (i32, i32) {
    %c0_i32 = arith.constant 0 : i32
    %c0_i32_0 = arith.constant 0 : i32
    %c0_i32_1 = arith.constant 0 : i32
    return %c0_i32, %c0_i32_0 : i32, i32
  }
  func.func @transform_1(%arg0: i32) -> (i32, i32) {
    %c0_i32 = arith.constant 0 : i32
    %c0_i32_0 = arith.constant 0 : i32
    %c0_i32_1 = arith.constant 0 : i32
    return %c0_i32, %c0_i32_0 : i32, i32
  }
  func.func @transform_2(%arg0: i32) -> (i32, i32) {
    %c0_i32 = arith.constant 0 : i32
    %c0_i32_0 = arith.constant 0 : i32
    %c0_i32_1 = arith.constant 0 : i32
    return %c0_i32, %c0_i32_0 : i32, i32
  }
  func.func @transform_3(%arg0: i32) -> (i32, i32) {
    %c0_i32 = arith.constant 0 : i32
    %c0_i32_0 = arith.constant 0 : i32
    %c0_i32_1 = arith.constant 0 : i32
    return %c0_i32, %c0_i32_0 : i32, i32
  }
  func.func @transform_4(%arg0: i32) -> (i32, i32) {
    %c0_i32 = arith.constant 0 : i32
    %c0_i32_0 = arith.constant 0 : i32
    %c0_i32_1 = arith.constant 0 : i32
    return %c0_i32, %c0_i32_0 : i32, i32
  }
  func.func @transform_5(%arg0: i32) -> (i32, i32) {
    %c0_i32 = arith.constant 0 : i32
    %c0_i32_0 = arith.constant 0 : i32
    %c0_i32_1 = arith.constant 0 : i32
    return %c0_i32, %c0_i32_0 : i32, i32
  }
}

</mosaic_0001>

<llo_original>
// kernel: squeeze.23
$region0: #{squeeze.23}
  %s0 = inlined_call_operand.vmem [shape: f32[8,63], index: 0, kind: input, shape index: {}]
  %s1 = inlined_call_operand.vmem [shape: f32[8,21,3], index: 1, kind: output, shape index: {}]
  $region1: #{squeeze.23} parent=0
    #allocation0 [shape = 'u8[86016]{0}', space=vmem, size = 0x15000, scoped, tag = 'scoped mem for output reshape']
    %v2 = vld [vmem:[%s0] sm:$0xff]
    %vm3 = vcmask 64512
    %4 = vst.msk [vmem:[#allocation0] sm:$0x7] %vm3, %v2
    %s5 = scalar_lea.vmem [#allocation0], 5
    %6 = vst.msk [vmem:[%s5] sm:$0x38] %vm3, %v2
    %s7 = scalar_lea.vmem [#allocation0], 10
    %8 = vst.msk [vmem:[%s7] sm:$0xc0] %vm3, %v2
    %s9 = scalar_lea.vmem %s0, 8
    %v10 = vld [vmem:[%s9] sm:$0xff]
    %vm11 = vcmask 64512
    %s12 = scalar_lea.vmem [#allocation0], 18
    %13 = vst.msk [vmem:[%s12] ss:$6 sm:$0x3] %vm11, %v10
    %s14 = scalar_lea.vmem [#allocation0], 23
    %15 = vst.msk [vmem:[%s14] sm:$0xc] %vm11, %v10
    %s16 = scalar_lea.vmem [#allocation0], 28
    %17 = vst.msk [vmem:[%s16] sm:$0x70] %vm11, %v10
    %s18 = scalar_lea.vmem [#allocation0], 33
    %19 = vst.msk [vmem:[%s18] sm:$0x80] %vm11, %v10
    %s20 = scalar_lea.vmem %s0, 16
    %v21 = vld [vmem:[%s20] sm:$0xff]
    %vm22 = vcmask 64512
    %s23 = scalar_lea.vmem [#allocation0], 41
    %24 = vst.msk [vmem:[%s23] sm:$0x3] %vm22, %v21
    %s25 = scalar_lea.vmem [#allocation0], 46
    %26 = vst.msk [vmem:[%s25] sm:$0x1c] %vm22, %v21
    %s27 = scalar_lea.vmem [#allocation0], 51
    %28 = vst.msk [vmem:[%s27] sm:$0xe0] %vm22, %v21
    %s29 = scalar_lea.vmem %s0, 24
    %v30 = vld [vmem:[%s29] sm:$0xff]
    %vm31 = vcmask 64512
    %s32 = scalar_lea.vmem [#allocation0], 64
    %33 = vst.msk [vmem:[%s32] sm:$0x7] %vm31, %v30
    %s34 = scalar_lea.vmem [#allocation0], 69
    %35 = vst.msk [vmem:[%s34] sm:$0x38] %vm31, %v30
    %s36 = scalar_lea.vmem [#allocation0], 74
    %37 = vst.msk [vmem:[%s36] sm:$0xc0] %vm31, %v30
    %s38 = scalar_lea.vmem %s0, 32
    %v39 = vld [vmem:[%s38] sm:$0xff]
    %vm40 = vcmask 64512
    %s41 = scalar_lea.vmem [#allocation0], 82
    %42 = vst.msk [vmem:[%s41] ss:$6 sm:$0x3] %vm40, %v39
    %s43 = scalar_lea.vmem [#allocation0], 87
    %44 = vst.msk [vmem:[%s43] sm:$0xc] %vm40, %v39
    %s45 = scalar_lea.vmem [#allocation0], 92
    %46 = vst.msk [vmem:[%s45] sm:$0x70] %vm40, %v39
    %s47 = scalar_lea.vmem [#allocation0], 97
    %48 = vst.msk [vmem:[%s47] sm:$0x80] %vm40, %v39
    %s49 = scalar_lea.vmem %s0, 40
    %v50 = vld [vmem:[%s49] sm:$0xff]
    %vm51 = vcmask 64512
    %s52 = scalar_lea.vmem [#allocation0], 105
    %53 = vst.msk [vmem:[%s52] sm:$0x3] %vm51, %v50
    %s54 = scalar_lea.vmem [#allocation0], 110
    %55 = vst.msk [vmem:[%s54] sm:$0x1c] %vm51, %v50
    %s56 = scalar_lea.vmem [#allocation0], 115
    %57 = vst.msk [vmem:[%s56] sm:$0xe0] %vm51, %v50
    %s58 = scalar_lea.vmem %s0, 48
    %v59 = vld [vmem:[%s58] sm:$0xff]
    %vm60 = vcmask 64512
    %s61 = scalar_lea.vmem [#allocation0], 128
    %62 = vst.msk [vmem:[%s61] sm:$0x7] %vm60, %v59
    %s63 = scalar_lea.vmem [#allocation0], 133
    %64 = vst.msk [vmem:[%s63] sm:$0x38] %vm60, %v59
    %s65 = scalar_lea.vmem [#allocation0], 138
    %66 = vst.msk [vmem:[%s65] sm:$0xc0] %vm60, %v59
    %s67 = scalar_lea.vmem %s0, 56
    %v68 = vld [vmem:[%s67] sm:$0x7f]
    %vm69 = vcmask 64512
    %s70 = scalar_lea.vmem [#allocation0], 146
    %71 = vst.msk [vmem:[%s70] ss:$6 sm:$0x3] %vm69, %v68
    %s72 = scalar_lea.vmem [#allocation0], 151
    %73 = vst.msk [vmem:[%s72] sm:$0xc] %vm69, %v68
    %s74 = scalar_lea.vmem [#allocation0], 156
    %75 = vst.msk [vmem:[%s74] sm:$0x70] %vm69, %v68
    %s77 = ssub.s32 16, 1
    %v78 = vld [vmem:[#allocation0] sm:%s77]
    %s80 = ssub.s32 16, 1
    %81 = vst [vmem:[%s1] sm:%s80] %v78
    %s82 = scalar_lea.vmem [#allocation0], 8
    %v83 = vld [vmem:[%s82] sm:%s77]
    %s85 = ssub.s32 16, 1
    %s86 = scalar_lea.vmem %s1, 4
    %87 = vst [vmem:[%s86] sm:%s85] %v83
    %s88 = scalar_lea.vmem [#allocation0], 16
    %v89 = vld [vmem:[%s88] sm:%s77]
    %s91 = ssub.s32 16, 1
    %s92 = scalar_lea.vmem %s1, 8
    %93 = vst [vmem:[%s92] sm:%s91] %v89
    %s94 = scalar_lea.vmem [#allocation0], 24
    %v95 = vld [vmem:[%s94] sm:%s77]
    %s97 = ssub.s32 16, 1
    %s98 = scalar_lea.vmem %s1, 12
    %99 = vst [vmem:[%s98] sm:%s97] %v95
    %s100 = scalar_lea.vmem [#allocation0], 32
    %v101 = vld [vmem:[%s100] sm:%s77]
    %s103 = ssub.s32 16, 1
    %s104 = scalar_lea.vmem %s1, 16
    %105 = vst [vmem:[%s104] sm:%s103] %v101
    %s106 = scalar_lea.vmem [#allocation0], 40
    %v107 = vld [vmem:[%s106] sm:%s77]
    %s109 = ssub.s32 16, 1
    %s110 = scalar_lea.vmem %s1, 20
    %111 = vst [vmem:[%s110] sm:%s109] %v107
    %s112 = scalar_lea.vmem [#allocation0], 48
    %v113 = vld [vmem:[%s112] sm:%s77]
    %s115 = ssub.s32 16, 1
    %s116 = scalar_lea.vmem %s1, 24
    %117 = vst [vmem:[%s116] sm:%s115] %v113
    %s118 = scalar_lea.vmem [#allocation0], 56
    %v119 = vld [vmem:[%s118] sm:%s77]
    %s121 = ssub.s32 16, 1
    %s122 = scalar_lea.vmem %s1, 28
    %123 = vst [vmem:[%s122] sm:%s121] %v119
    %s124 = scalar_lea.vmem [#allocation0], 64
    %v125 = vld [vmem:[%s124] sm:%s77]
    %s127 = ssub.s32 16, 1
    %s128 = scalar_lea.vmem %s1, 32
    %129 = vst [vmem:[%s128] sm:%s127] %v125
    %s130 = scalar_lea.vmem [#allocation0], 72
    %v131 = vld [vmem:[%s130] sm:%s77]
    %s133 = ssub.s32 16, 1
    %s134 = scalar_lea.vmem %s1, 36
    %135 = vst [vmem:[%s134] sm:%s133] %v131
    %s136 = scalar_lea.vmem [#allocation0], 80
    %v137 = vld [vmem:[%s136] sm:%s77]
    %s139 = ssub.s32 16, 1
    %s140 = scalar_lea.vmem %s1, 40
    %141 = vst [vmem:[%s140] sm:%s139] %v137
    %s142 = scalar_lea.vmem [#allocation0], 88
    %v143 = vld [vmem:[%s142] sm:%s77]
    %s145 = ssub.s32 16, 1
    %s146 = scalar_lea.vmem %s1, 44
    %147 = vst [vmem:[%s146] sm:%s145] %v143
    %s148 = scalar_lea.vmem [#allocation0], 96
    %v149 = vld [vmem:[%s148] sm:%s77]
    %s151 = ssub.s32 16, 1
    %s152 = scalar_lea.vmem %s1, 48
    %153 = vst [vmem:[%s152] sm:%s151] %v149
    %s154 = scalar_lea.vmem [#allocation0], 104
    %v155 = vld [vmem:[%s154] sm:%s77]
    %s157 = ssub.s32 16, 1
    %s158 = scalar_lea.vmem %s1, 52
    %159 = vst [vmem:[%s158] sm:%s157] %v155
    %s160 = scalar_lea.vmem [#allocation0], 112
    %v161 = vld [vmem:[%s160] sm:%s77]
    %s163 = ssub.s32 16, 1
    %s164 = scalar_lea.vmem %s1, 56
    %165 = vst [vmem:[%s164] sm:%s163] %v161
    %s166 = scalar_lea.vmem [#allocation0], 120
    %v167 = vld [vmem:[%s166] sm:%s77]
    %s169 = ssub.s32 16, 1
    %s170 = scalar_lea.vmem %s1, 60
    %171 = vst [vmem:[%s170] sm:%s169] %v167
    %s172 = scalar_lea.vmem [#allocation0], 128
    %v173 = vld [vmem:[%s172] sm:%s77]
    %s175 = ssub.s32 16, 1
    %s176 = scalar_lea.vmem %s1, 64
    %177 = vst [vmem:[%s176] sm:%s175] %v173
    %s178 = scalar_lea.vmem [#allocation0], 136
    %v179 = vld [vmem:[%s178] sm:%s77]
    %s181 = ssub.s32 16, 1
    %s182 = scalar_lea.vmem %s1, 68
    %183 = vst [vmem:[%s182] sm:%s181] %v179
    %s184 = scalar_lea.vmem [#allocation0], 144
    %v185 = vld [vmem:[%s184] sm:%s77]
    %s187 = ssub.s32 16, 1
    %s188 = scalar_lea.vmem %s1, 72
    %189 = vst [vmem:[%s188] sm:%s187] %v185
    %s190 = scalar_lea.vmem [#allocation0], 152
    %v191 = vld [vmem:[%s190] sm:%s77]
    %s193 = ssub.s32 16, 1
    %s194 = scalar_lea.vmem %s1, 76
    %195 = vst [vmem:[%s194] sm:%s193] %v191
    %s196 = scalar_lea.vmem [#allocation0], 160
    %v197 = vld [vmem:[%s196] sm:%s77]
    %s199 = ssub.s32 16, 1
    %s200 = scalar_lea.vmem %s1, 80
    %201 = vst [vmem:[%s200] sm:%s199] %v197

// kernel: squeeze.27
$region0: #{squeeze.27}
  %s0 = inlined_call_operand.vmem [shape: f32[128,3], index: 0, kind: input, shape index: {}]
  %s1 = inlined_call_operand.hbm [shape: f32[8,48], index: 1, kind: output, shape index: {}]
  $region1: #{squeeze.27} parent=0
    #allocation0 [shape = 'u8[4096]{0}', space=vmem, size = 0x1000, scoped, tag = 'operand span for operand 1']
    #allocation1 [shape = 's32[1]{0}', space=sflag, size = 0x4, scoped, tag = 'scoped memory for squeeze.27']
    %2 = vsyncpa [#allocation1], 0
    %s3 = smov 3
    %v4 = vld [vmem:[%s0] ss:$16 sm:%s3]
    %s5 = smov 12
    %v6 = vld [vmem:[%s0] ss:$16 sm:%s5]
    %vm7 = vcmask 1043458
    %v8 = vsel %vm7, %v6, %v4
    %s9 = smov 48
    %v10 = vld [vmem:[%s0] ss:$16 sm:%s9]
    %vm11 = vcmask 1045508
    %v12 = vsel %vm11, %v10, %v8
    %s13 = smov 192
    %v14 = vld [vmem:[%s0] ss:$16 sm:%s13]
    %vm15 = vcmask 1047558
    %v16 = vsel %vm15, %v14, %v12
    %vm17 = vcmask 23552
    %18 = vst.msk [vmem:[#allocation0] sm:$0xff] %vm17, %v16
    %s19 = scalar_lea.vmem %s0, 15
    %s20 = smov 3
    %v21 = vld [vmem:[%s19] ss:$16 sm:%s20]
    %s22 = scalar_lea.vmem %s0, 15
    %s23 = smov 12
    %v24 = vld [vmem:[%s22] ss:$16 sm:%s23]
    %vm25 = vcmask 1043458
    %v26 = vsel %vm25, %v24, %v21
    %s27 = scalar_lea.vmem %s0, 15
    %s28 = smov 48
    %v29 = vld [vmem:[%s27] ss:$16 sm:%s28]
    %vm30 = vcmask 1045508
    %v31 = vsel %vm30, %v29, %v26
    %s32 = scalar_lea.vmem %s0, 15
    %s33 = smov 192
    %v34 = vld [vmem:[%s32] ss:$16 sm:%s33]
    %vm35 = vcmask 1047558
    %v36 = vsel %vm35, %v34, %v31
    %37 = vrot.lane.b32.xlu0 %v36, 45
    %v38 = vpop.permute.xlu0 %37
    %vm39 = vcmask 392552
    %40 = vst.msk [vmem:[#allocation0] sm:$0xff] %vm39, %v38
    %s41 = scalar_lea.vmem %s0, 14
    %s42 = smov 3
    %v43 = vld [vmem:[%s41] ss:$16 sm:%s42]
    %s44 = scalar_lea.vmem %s0, 14
    %s45 = smov 12
    %v46 = vld [vmem:[%s44] ss:$16 sm:%s45]
    %vm47 = vcmask 1043458
    %v48 = vsel %vm47, %v46, %v43
    %s49 = scalar_lea.vmem %s0, 14
    %s50 = smov 48
    %v51 = vld [vmem:[%s49] ss:$16 sm:%s50]
    %vm52 = vcmask 1045508
    %v53 = vsel %vm52, %v51, %v48
    %s54 = scalar_lea.vmem %s0, 14
    %s55 = smov 192
    %v56 = vld [vmem:[%s54] ss:$16 sm:%s55]
    %vm57 = vcmask 1047558
    %v58 = vsel %vm57, %v56, %v53
    %59 = vrot.lane.b32.xlu0 %v58, 42
    %v60 = vpop.permute.xlu0 %59
    %vm61 = vcmask 367952
    %62 = vst.msk [vmem:[#allocation0] sm:$0xff] %vm61, %v60
    %s63 = scalar_lea.vmem %s0, 13
    %s64 = smov 3
    %v65 = vld [vmem:[%s63] ss:$16 sm:%s64]
    %s66 = scalar_lea.vmem %s0, 13
    %s67 = smov 12
    %v68 = vld [vmem:[%s66] ss:$16 sm:%s67]
    %vm69 = vcmask 1043458
    %v70 = vsel %vm69, %v68, %v65
    %s71 = scalar_lea.vmem %s0, 13
    %s72 = smov 48
    %v73 = vld [vmem:[%s71] ss:$16 sm:%s72]
    %vm74 = vcmask 1045508
    %v75 = vsel %vm74, %v73, %v70
    %s76 = scalar_lea.vmem %s0, 13
    %s77 = smov 192
    %v78 = vld [vmem:[%s76] ss:$16 sm:%s77]
    %vm79 = vcmask 1047558
    %v80 = vsel %vm79, %v78, %v75
    %81 = vrot.lane.b32.xlu0 %v80, 39
    %v82 = vpop.permute.xlu0 %81
    %vm83 = vcmask 343352
    %84 = vst.msk [vmem:[#allocation0] sm:$0xff] %vm83, %v82
    %s85 = scalar_lea.vmem %s0, 12
    %s86 = smov 3
    %v87 = vld [vmem:[%s85] ss:$16 sm:%s86]
    %s88 = scalar_lea.vmem %s0, 12
    %s89 = smov 12
    %v90 = vld [vmem:[%s88] ss:$16 sm:%s89]
    %vm91 = vcmask 1043458
    %v92 = vsel %vm91, %v90, %v87
    %s93 = scalar_lea.vmem %s0, 12
    %s94 = smov 48
    %v95 = vld [vmem:[%s93] ss:$16 sm:%s94]
    %vm96 = vcmask 1045508
    %v97 = vsel %vm96, %v95, %v92
    %s98 = scalar_lea.vmem %s0, 12
    %s99 = smov 192
    %v100 = vld [vmem:[%s98] ss:$16 sm:%s99]
    %vm101 = vcmask 1047558
    %v102 = vsel %vm101, %v100, %v97
    %103 = vrot.lane.b32.xlu0 %v102, 36
    %v104 = vpop.permute.xlu0 %103
    %vm105 = vcmask 318752
    %106 = vst.msk [vmem:[#allocation0] sm:$0xff] %vm105, %v104
    %s107 = scalar_lea.vmem %s0, 11
    %s108 = smov 3
    %v109 = vld [vmem:[%s107] ss:$16 sm:%s108]
    %s110 = scalar_lea.vmem %s0, 11
    %s111 = smov 12
    %v112 = vld [vmem:[%s110] ss:$16 sm:%s111]
    %vm113 = vcmask 1043458
    %v114 = vsel %vm113, %v112, %v109
    %s115 = scalar_lea.vmem %s0, 11
    %s116 = smov 48
    %v117 = vld [vmem:[%s115] ss:$16 sm:%s116]
    %vm118 = vcmask 1045508
    %v119 = vsel %vm118, %v117, %v114
    %s120 = scalar_lea.vmem %s0, 11
    %s121 = smov 192
    %v122 = vld [vmem:[%s120] ss:$16 sm:%s121]
    %vm123 = vcmask 1047558
    %v124 = vsel %vm123, %v122, %v119
    %125 = vrot.lane.b32.xlu0 %v124, 33
    %v126 = vpop.permute.xlu0 %125
    %vm127 = vcmask 294152
    %128 = vst.msk [vmem:[#allocation0] sm:$0xff] %vm127, %v126
    %s129 = scalar_lea.vmem %s0, 10
    %s130 = smov 3
    %v131 = vld [vmem:[%s129] ss:$16 sm:%s130]
    %s132 = scalar_lea.vmem %s0, 10
    %s133 = smov 12
    %v134 = vld [vmem:[%s132] ss:$16 sm:%s133]
    %vm135 = vcmask 1043458
    %v136 = vsel %vm135, %v134, %v131
    %s137 = scalar_lea.vmem %s0, 10
    %s138 = smov 48
    %v139 = vld [vmem:[%s137] ss:$16 sm:%s138]
    %vm140 = vcmask 1045508
    %v141 = vsel %vm140, %v139, %v136
    %s142 = scalar_lea.vmem %s0, 10
    %s143 = smov 192
    %v144 = vld [vmem:[%s142] ss:$16 sm:%s143]
    %vm145 = vcmask 1047558
    %v146 = vsel %vm145, %v144, %v141
    %147 = vrot.lane.b32.xlu0 %v146, 30
    %v148 = vpop.permute.xlu0 %147
    %vm149 = vcmask 269552
    %150 = vst.msk [vmem:[#allocation0] sm:$0xff] %vm149, %v148
    %s151 = scalar_lea.vmem %s0, 9
    %s152 = smov 3
    %v153 = vld [vmem:[%s151] ss:$16 sm:%s152]
    %s154 = scalar_lea.vmem %s0, 9
    %s155 = smov 12
    %v156 = vld [vmem:[%s154] ss:$16 sm:%s155]
    %vm157 = vcmask 1043458
    %v158 = vsel %vm157, %v156, %v153
    %s159 = scalar_lea.vmem %s0, 9
    %s160 = smov 48
    %v161 = vld [vmem:[%s159] ss:$16 sm:%s160]
    %vm162 = vcmask 1045508
    %v163 = vsel %vm162, %v161, %v158
    %s164 = scalar_lea.vmem %s0, 9
    %s165 = smov 192
    %v166 = vld [vmem:[%s164] ss:$16 sm:%s165]
    %vm167 = vcmask 1047558
    %v168 = vsel %vm167, %v166, %v163
    %169 = vrot.lane.b32.xlu0 %v168, 27
    %v170 = vpop.permute.xlu0 %169
    %vm171 = vcmask 244952
    %172 = vst.msk [vmem:[#allocation0] sm:$0xff] %vm171, %v170
    %s173 = scalar_lea.vmem %s0, 8
    %s174 = smov 3
    %v175 = vld [vmem:[%s173] ss:$16 sm:%s174]
    %s176 = scalar_lea.vmem %s0, 8
    %s177 = smov 12
    %v178 = vld [vmem:[%s176] ss:$16 sm:%s177]
    %vm179 = vcmask 1043458
    %v180 = vsel %vm179, %v178, %v175
    %s181 = scalar_lea.vmem %s0, 8
    %s182 = smov 48
    %v183 = vld [vmem:[%s181] ss:$16 sm:%s182]
    %vm184 = vcmask 1045508
    %v185 = vsel %vm184, %v183, %v180
    %s186 = scalar_lea.vmem %s0, 8
    %s187 = smov 192
    %v188 = vld [vmem:[%s186] ss:$16 sm:%s187]
    %vm189 = vcmask 1047558
    %v190 = vsel %vm189, %v188, %v185
    %191 = vrot.lane.b32.xlu0 %v190, 24
    %v192 = vpop.permute.xlu0 %191
    %vm193 = vcmask 220352
    %194 = vst.msk [vmem:[#allocation0] sm:$0xff] %vm193, %v192
    %s195 = scalar_lea.vmem %s0, 7
    %s196 = smov 3
    %v197 = vld [vmem:[%s195] ss:$16 sm:%s196]
    %s198 = scalar_lea.vmem %s0, 7
    %s199 = smov 12
    %v200 = vld [vmem:[%s198] ss:$16 sm:%s199]
    %vm201 = vcmask 1043458
    %v202 = vsel %vm201, %v200, %v197
    %s203 = scalar_lea.vmem %s0, 7
    %s204 = smov 48
    %v205 = vld [vmem:[%s203] ss:$16 sm:%s204]
    %vm206 = vcmask 1045508
    %v207 = vsel %vm206, %v205, %v202
    %s208 = scalar_lea.vmem %s0, 7
    %s209 = smov 192
    %v210 = vld [vmem:[%s208] ss:$16 sm:%s209]
    %vm211 = vcmask 1047558
    %v212 = vsel %vm211, %v210, %v207
    %213 = vrot.lane.b32.xlu0 %v212, 21
    %v214 = vpop.permute.xlu0 %213
    %vm215 = vcmask 195752
    %216 = vst.msk [vmem:[#allocation0] sm:$0xff] %vm215, %v214
    %s217 = scalar_lea.vmem %s0, 6
    %s218 = smov 3
    %v219 = vld [vmem:[%s217] ss:$16 sm:%s218]
    %s220 = scalar_lea.vmem %s0, 6
    %s221 = smov 12
    %v222 = vld [vmem:[%s220] ss:$16 sm:%s221]
    %vm223 = vcmask 1043458
    %v224 = vsel %vm223, %v222, %v219
    %s225 = scalar_lea.vmem %s0, 6
    %s226 = smov 48
    %v227 = vld [vmem:[%s225] ss:$16 sm:%s226]
    %vm228 = vcmask 1045508
    %v229 = vsel %vm228, %v227, %v224
    %s230 = scalar_lea.vmem %s0, 6
    %s231 = smov 192
    %v232 = vld [vmem:[%s230] ss:$16 sm:%s231]
    %vm233 = vcmask 1047558
    %v234 = vsel %vm233, %v232, %v229
    %235 = vrot.lane.b32.xlu0 %v234, 18
    %v236 = vpop.permute.xlu0 %235
    %vm237 = vcmask 171152
    %238 = vst.msk [vmem:[#allocation0] sm:$0xff] %vm237, %v236
    %s239 = scalar_lea.vmem %s0, 5
    %s240 = smov 3
    %v241 = vld [vmem:[%s239] ss:$16 sm:%s240]
    %s242 = scalar_lea.vmem %s0, 5
    %s243 = smov 12
    %v244 = vld [vmem:[%s242] ss:$16 sm:%s243]
    %vm245 = vcmask 1043458
    %v246 = vsel %vm245, %v244, %v241
    %s247 = scalar_lea.vmem %s0, 5
    %s248 = smov 48
    %v249 = vld [vmem:[%s247] ss:$16 sm:%s248]
    %vm250 = vcmask 1045508
    %v251 = vsel %vm250, %v249, %v246
    %s252 = scalar_lea.vmem %s0, 5
    %s253 = smov 192
    %v254 = vld [vmem:[%s252] ss:$16 sm:%s253]
    %vm255 = vcmask 1047558
    %v256 = vsel %vm255, %v254, %v251
    %257 = vrot.lane.b32.xlu0 %v256, 15
    %v258 = vpop.permute.xlu0 %257
    %vm259 = vcmask 146552
    %260 = vst.msk [vmem:[#allocation0] sm:$0xff] %vm259, %v258
    %s261 = scalar_lea.vmem %s0, 4
    %s262 = smov 3
    %v263 = vld [vmem:[%s261] ss:$16 sm:%s262]
    %s264 = scalar_lea.vmem %s0, 4
    %s265 = smov 12
    %v266 = vld [vmem:[%s264] ss:$16 sm:%s265]
    %vm267 = vcmask 1043458
    %v268 = vsel %vm267, %v266, %v263
    %s269 = scalar_lea.vmem %s0, 4
    %s270 = smov 48
    %v271 = vld [vmem:[%s269] ss:$16 sm:%s270]
    %vm272 = vcmask 1045508
    %v273 = vsel %vm272, %v271, %v268
    %s274 = scalar_lea.vmem %s0, 4
    %s275 = smov 192
    %v276 = vld [vmem:[%s274] ss:$16 sm:%s275]
    %vm277 = vcmask 1047558
    %v278 = vsel %vm277, %v276, %v273
    %279 = vrot.lane.b32.xlu0 %v278, 12
    %v280 = vpop.permute.xlu0 %279
    %vm281 = vcmask 121952
    %282 = vst.msk [vmem:[#allocation0] sm:$0xff] %vm281, %v280
    %s283 = scalar_lea.vmem %s0, 3
    %s284 = smov 3
    %v285 = vld [vmem:[%s283] ss:$16 sm:%s284]
    %s286 = scalar_lea.vmem %s0, 3
    %s287 = smov 12
    %v288 = vld [vmem:[%s286] ss:$16 sm:%s287]
    %vm289 = vcmask 1043458
    %v290 = vsel %vm289, %v288, %v285
    %s291 = scalar_lea.vmem %s0, 3
    %s292 = smov 48
    %v293 = vld [vmem:[%s291] ss:$16 sm:%s292]
    %vm294 = vcmask 1045508
    %v295 = vsel %vm294, %v293, %v290
    %s296 = scalar_lea.vmem %s0, 3
    %s297 = smov 192
    %v298 = vld [vmem:[%s296] ss:$16 sm:%s297]
    %vm299 = vcmask 1047558
    %v300 = vsel %vm299, %v298, %v295
    %301 = vrot.lane.b32.xlu0 %v300, 9
    %v302 = vpop.permute.xlu0 %301
    %vm303 = vcmask 97352
    %304 = vst.msk [vmem:[#allocation0] sm:$0xff] %vm303, %v302
    %s305 = scalar_lea.vmem %s0, 2
    %s306 = smov 3
    %v307 = vld [vmem:[%s305] ss:$16 sm:%s306]
    %s308 = scalar_lea.vmem %s0, 2
    %s309 = smov 12
    %v310 = vld [vmem:[%s308] ss:$16 sm:%s309]
    %vm311 = vcmask 1043458
    %v312 = vsel %vm311, %v310, %v307
    %s313 = scalar_lea.vmem %s0, 2
    %s314 = smov 48
    %v315 = vld [vmem:[%s313] ss:$16 sm:%s314]
    %vm316 = vcmask 1045508
    %v317 = vsel %vm316, %v315, %v312
    %s318 = scalar_lea.vmem %s0, 2
    %s319 = smov 192
    %v320 = vld [vmem:[%s318] ss:$16 sm:%s319]
    %vm321 = vcmask 1047558
    %v322 = vsel %vm321, %v320, %v317
    %323 = vrot.lane.b32.xlu0 %v322, 6
    %v324 = vpop.permute.xlu0 %323
    %vm325 = vcmask 72752
    %326 = vst.msk [vmem:[#allocation0] sm:$0xff] %vm325, %v324
    %s327 = scalar_lea.vmem %s0, 1
    %s328 = smov 3
    %v329 = vld [vmem:[%s327] ss:$16 sm:%s328]
    %s330 = scalar_lea.vmem %s0, 1
    %s331 = smov 12
    %v332 = vld [vmem:[%s330] ss:$16 sm:%s331]
    %vm333 = vcmask 1043458
    %v334 = vsel %vm333, %v332, %v329
    %s335 = scalar_lea.vmem %s0, 1
    %s336 = smov 48
    %v337 = vld [vmem:[%s335] ss:$16 sm:%s336]
    %vm338 = vcmask 1045508
    %v339 = vsel %vm338, %v337, %v334
    %s340 = scalar_lea.vmem %s0, 1
    %s341 = smov 192
    %v342 = vld [vmem:[%s340] ss:$16 sm:%s341]
    %vm343 = vcmask 1047558
    %v344 = vsel %vm343, %v342, %v339
    %345 = vrot.lane.b32.xlu0 %v344, 3
    %v346 = vpop.permute.xlu0 %345
    %vm347 = vcmask 48152
    %348 = vst.msk [vmem:[#allocation0] sm:$0xff] %vm347, %v346
    %350 = vsyncadd [#allocation1], 0
    %s352 = sshll.u32 [#allocation0], 4
    %s353 = int_to_ptr.vmem [resolvable:$true] %s352
    %s354 = sshll.u32 %s1, 4
    %s355 = int_to_ptr.hbm [resolvable:$true] %s354
    %357 = dma.vmem_to_hbm [thread:$0]  %s353, 128, %s355, [#allocation1]
    %359 = dma.done [#allocation1], 128
    %360 = vsyncpa [#allocation1], 1

// kernel: squeeze.21
$region0: #{squeeze.21}
  %s0 = inlined_call_operand.vmem [shape: f32[8,192], index: 0, kind: input, shape index: {}]
  %s1 = inlined_call_operand.vmem [shape: f32[8,64,3], index: 1, kind: output, shape index: {}]
  $region1: #{squeeze.21} parent=0
    #allocation0 [shape = 'u8[262144]{0}', space=vmem, size = 0x40000, scoped, tag = 'scoped mem for output reshape']
    %v2 = vld [vmem:[%s0] sm:$0xff]
    %vm3 = vcmask 64512
    %4 = vst.msk [vmem:[#allocation0] sm:$0x7] %vm3, %v2
    %s5 = scalar_lea.vmem [#allocation0], 5
    %6 = vst.msk [vmem:[%s5] sm:$0x38] %vm3, %v2
    %s7 = scalar_lea.vmem [#allocation0], 10
    %8 = vst.msk [vmem:[%s7] sm:$0xc0] %vm3, %v2
    %s9 = scalar_lea.vmem %s0, 8
    %v10 = vld [vmem:[%s9] sm:$0xff]
    %vm11 = vcmask 64512
    %s12 = scalar_lea.vmem [#allocation0], 18
    %13 = vst.msk [vmem:[%s12] ss:$6 sm:$0x3] %vm11, %v10
    %s14 = scalar_lea.vmem [#allocation0], 23
    %15 = vst.msk [vmem:[%s14] sm:$0xc] %vm11, %v10
    %s16 = scalar_lea.vmem [#allocation0], 28
    %17 = vst.msk [vmem:[%s16] sm:$0x70] %vm11, %v10
    %s18 = scalar_lea.vmem [#allocation0], 33
    %19 = vst.msk [vmem:[%s18] sm:$0x80] %vm11, %v10
    %s20 = scalar_lea.vmem %s0, 16
    %v21 = vld [vmem:[%s20] sm:$0xff]
    %vm22 = vcmask 64512
    %s23 = scalar_lea.vmem [#allocation0], 41
    %24 = vst.msk [vmem:[%s23] sm:$0x3] %vm22, %v21
    %s25 = scalar_lea.vmem [#allocation0], 46
    %26 = vst.msk [vmem:[%s25] sm:$0x1c] %vm22, %v21
    %s27 = scalar_lea.vmem [#allocation0], 51
    %28 = vst.msk [vmem:[%s27] sm:$0xe0] %vm22, %v21
    %s29 = scalar_lea.vmem %s0, 24
    %v30 = vld [vmem:[%s29] sm:$0xff]
    %vm31 = vcmask 64512
    %s32 = scalar_lea.vmem [#allocation0], 64
    %33 = vst.msk [vmem:[%s32] sm:$0x7] %vm31, %v30
    %s34 = scalar_lea.vmem [#allocation0], 69
    %35 = vst.msk [vmem:[%s34] sm:$0x38] %vm31, %v30
    %s36 = scalar_lea.vmem [#allocation0], 74
    %37 = vst.msk [vmem:[%s36] sm:$0xc0] %vm31, %v30
    %s38 = scalar_lea.vmem %s0, 32
    %v39 = vld [vmem:[%s38] sm:$0xff]
    %vm40 = vcmask 64512
    %s41 = scalar_lea.vmem [#allocation0], 82
    %42 = vst.msk [vmem:[%s41] ss:$6 sm:$0x3] %vm40, %v39
    %s43 = scalar_lea.vmem [#allocation0], 87
    %44 = vst.msk [vmem:[%s43] sm:$0xc] %vm40, %v39
    %s45 = scalar_lea.vmem [#allocation0], 92
    %46 = vst.msk [vmem:[%s45] sm:$0x70] %vm40, %v39
    %s47 = scalar_lea.vmem [#allocation0], 97
    %48 = vst.msk [vmem:[%s47] sm:$0x80] %vm40, %v39
    %s49 = scalar_lea.vmem %s0, 40
    %v50 = vld [vmem:[%s49] sm:$0xff]
    %vm51 = vcmask 64512
    %s52 = scalar_lea.vmem [#allocation0], 105
    %53 = vst.msk [vmem:[%s52] sm:$0x3] %vm51, %v50
    %s54 = scalar_lea.vmem [#allocation0], 110
    %55 = vst.msk [vmem:[%s54] sm:$0x1c] %vm51, %v50
    %s56 = scalar_lea.vmem [#allocation0], 115
    %57 = vst.msk [vmem:[%s56] sm:$0xe0] %vm51, %v50
    %s58 = scalar_lea.vmem %s0, 48
    %v59 = vld [vmem:[%s58] sm:$0xff]
    %vm60 = vcmask 64512
    %s61 = scalar_lea.vmem [#allocation0], 128
    %62 = vst.msk [vmem:[%s61] sm:$0x7] %vm60, %v59
    %s63 = scalar_lea.vmem [#allocation0], 133
    %64 = vst.msk [vmem:[%s63] sm:$0x38] %vm60, %v59
    %s65 = scalar_lea.vmem [#allocation0], 138
    %66 = vst.msk [vmem:[%s65] sm:$0xc0] %vm60, %v59
    %s67 = scalar_lea.vmem %s0, 56
    %v68 = vld [vmem:[%s67] sm:$0xff]
    %vm69 = vcmask 64512
    %s70 = scalar_lea.vmem [#allocation0], 146
    %71 = vst.msk [vmem:[%s70] ss:$6 sm:$0x3] %vm69, %v68
    %s72 = scalar_lea.vmem [#allocation0], 151
    %73 = vst.msk [vmem:[%s72] sm:$0xc] %vm69, %v68
    %s74 = scalar_lea.vmem [#allocation0], 156
    %75 = vst.msk [vmem:[%s74] sm:$0x70] %vm69, %v68
    %s76 = scalar_lea.vmem [#allocation0], 161
    %77 = vst.msk [vmem:[%s76] sm:$0x80] %vm69, %v68
    %s78 = scalar_lea.vmem %s0, 64
    %v79 = vld [vmem:[%s78] sm:$0xff]
    %vm80 = vcmask 64512
    %s81 = scalar_lea.vmem [#allocation0], 169
    %82 = vst.msk [vmem:[%s81] sm:$0x3] %vm80, %v79
    %s83 = scalar_lea.vmem [#allocation0], 174
    %84 = vst.msk [vmem:[%s83] sm:$0x1c] %vm80, %v79
    %s85 = scalar_lea.vmem [#allocation0], 179
    %86 = vst.msk [vmem:[%s85] sm:$0xe0] %vm80, %v79
    %s87 = scalar_lea.vmem %s0, 72
    %v88 = vld [vmem:[%s87] sm:$0xff]
    %vm89 = vcmask 64512
    %s90 = scalar_lea.vmem [#allocation0], 192
    %91 = vst.msk [vmem:[%s90] sm:$0x7] %vm89, %v88
    %s92 = scalar_lea.vmem [#allocation0], 197
    %93 = vst.msk [vmem:[%s92] sm:$0x38] %vm89, %v88
    %s94 = scalar_lea.vmem [#allocation0], 202
    %95 = vst.msk [vmem:[%s94] sm:$0xc0] %vm89, %v88
    %s96 = scalar_lea.vmem %s0, 80
    %v97 = vld [vmem:[%s96] sm:$0xff]
    %vm98 = vcmask 64512
    %s99 = scalar_lea.vmem [#allocation0], 210
    %100 = vst.msk [vmem:[%s99] ss:$6 sm:$0x3] %vm98, %v97
    %s101 = scalar_lea.vmem [#allocation0], 215
    %102 = vst.msk [vmem:[%s101] sm:$0xc] %vm98, %v97
    %s103 = scalar_lea.vmem [#allocation0], 220
    %104 = vst.msk [vmem:[%s103] sm:$0x70] %vm98, %v97
    %s105 = scalar_lea.vmem [#allocation0], 225
    %106 = vst.msk [vmem:[%s105] sm:$0x80] %vm98, %v97
    %s107 = scalar_lea.vmem %s0, 88
    %v108 = vld [vmem:[%s107] sm:$0xff]
    %vm109 = vcmask 64512
    %s110 = scalar_lea.vmem [#allocation0], 233
    %111 = vst.msk [vmem:[%s110] sm:$0x3] %vm109, %v108
    %s112 = scalar_lea.vmem [#allocation0], 238
    %113 = vst.msk [vmem:[%s112] sm:$0x1c] %vm109, %v108
    %s114 = scalar_lea.vmem [#allocation0], 243
    %115 = vst.msk [vmem:[%s114] sm:$0xe0] %vm109, %v108
    %s116 = scalar_lea.vmem %s0, 96
    %v117 = vld [vmem:[%s116] sm:$0xff]
    %vm118 = vcmask 64512
    %s119 = scalar_lea.vmem [#allocation0], 256
    %120 = vst.msk [vmem:[%s119] sm:$0x7] %vm118, %v117
    %s121 = scalar_lea.vmem [#allocation0], 261
    %122 = vst.msk [vmem:[%s121] sm:$0x38] %vm118, %v117
    %s123 = scalar_lea.vmem [#allocation0], 266
    %124 = vst.msk [vmem:[%s123] sm:$0xc0] %vm118, %v117
    %s125 = scalar_lea.vmem %s0, 104
    %v126 = vld [vmem:[%s125] sm:$0xff]
    %vm127 = vcmask 64512
    %s128 = scalar_lea.vmem [#allocation0], 274
    %129 = vst.msk [vmem:[%s128] ss:$6 sm:$0x3] %vm127, %v126
    %s130 = scalar_lea.vmem [#allocation0], 279
    %131 = vst.msk [vmem:[%s130] sm:$0xc] %vm127, %v126
    %s132 = scalar_lea.vmem [#allocation0], 284
    %133 = vst.msk [vmem:[%s132] sm:$0x70] %vm127, %v126
    %s134 = scalar_lea.vmem [#allocation0], 289
    %135 = vst.msk [vmem:[%s134] sm:$0x80] %vm127, %v126
    %s136 = scalar_lea.vmem %s0, 112
    %v137 = vld [vmem:[%s136] sm:$0xff]
    %vm138 = vcmask 64512
    %s139 = scalar_lea.vmem [#allocation0], 297
    %140 = vst.msk [vmem:[%s139] sm:$0x3] %vm138, %v137
    %s141 = scalar_lea.vmem [#allocation0], 302
    %142 = vst.msk [vmem:[%s141] sm:$0x1c] %vm138, %v137
    %s143 = scalar_lea.vmem [#allocation0], 307
    %144 = vst.msk [vmem:[%s143] sm:$0xe0] %vm138, %v137
    %s145 = scalar_lea.vmem %s0, 120
    %v146 = vld [vmem:[%s145] sm:$0xff]
    %vm147 = vcmask 64512
    %s148 = scalar_lea.vmem [#allocation0], 320
    %149 = vst.msk [vmem:[%s148] sm:$0x7] %vm147, %v146
    %s150 = scalar_lea.vmem [#allocation0], 325
    %151 = vst.msk [vmem:[%s150] sm:$0x38] %vm147, %v146
    %s152 = scalar_lea.vmem [#allocation0], 330
    %153 = vst.msk [vmem:[%s152] sm:$0xc0] %vm147, %v146
    %s154 = scalar_lea.vmem %s0, 128
    %v155 = vld [vmem:[%s154] sm:$0xff]
    %vm156 = vcmask 64512
    %s157 = scalar_lea.vmem [#allocation0], 338
    %158 = vst.msk [vmem:[%s157] ss:$6 sm:$0x3] %vm156, %v155
    %s159 = scalar_lea.vmem [#allocation0], 343
    %160 = vst.msk [vmem:[%s159] sm:$0xc] %vm156, %v155
    %s161 = scalar_lea.vmem [#allocation0], 348
    %162 = vst.msk [vmem:[%s161] sm:$0x70] %vm156, %v155
    %s163 = scalar_lea.vmem [#allocation0], 353
    %164 = vst.msk [vmem:[%s163] sm:$0x80] %vm156, %v155
    %s165 = scalar_lea.vmem %s0, 136
    %v166 = vld [vmem:[%s165] sm:$0xff]
    %vm167 = vcmask 64512
    %s168 = scalar_lea.vmem [#allocation0], 361
    %169 = vst.msk [vmem:[%s168] sm:$0x3] %vm167, %v166
    %s170 = scalar_lea.vmem [#allocation0], 366
    %171 = vst.msk [vmem:[%s170] sm:$0x1c] %vm167, %v166
    %s172 = scalar_lea.vmem [#allocation0], 371
    %173 = vst.msk [vmem:[%s172] sm:$0xe0] %vm167, %v166
    %s174 = scalar_lea.vmem %s0, 144
    %v175 = vld [vmem:[%s174] sm:$0xff]
    %vm176 = vcmask 64512
    %s177 = scalar_lea.vmem [#allocation0], 384
    %178 = vst.msk [vmem:[%s177] sm:$0x7] %vm176, %v175
    %s179 = scalar_lea.vmem [#allocation0], 389
    %180 = vst.msk [vmem:[%s179] sm:$0x38] %vm176, %v175
    %s181 = scalar_lea.vmem [#allocation0], 394
    %182 = vst.msk [vmem:[%s181] sm:$0xc0] %vm176, %v175
    %s183 = scalar_lea.vmem %s0, 152
    %v184 = vld [vmem:[%s183] sm:$0xff]
    %vm185 = vcmask 64512
    %s186 = scalar_lea.vmem [#allocation0], 402
    %187 = vst.msk [vmem:[%s186] ss:$6 sm:$0x3] %vm185, %v184
    %s188 = scalar_lea.vmem [#allocation0], 407
    %189 = vst.msk [vmem:[%s188] sm:$0xc] %vm185, %v184
    %s190 = scalar_lea.vmem [#allocation0], 412
    %191 = vst.msk [vmem:[%s190] sm:$0x70] %vm185, %v184
    %s192 = scalar_lea.vmem [#allocation0], 417
    %193 = vst.msk [vmem:[%s192] sm:$0x80] %vm185, %v184
    %s194 = scalar_lea.vmem %s0, 160
    %v195 = vld [vmem:[%s194] sm:$0xff]
    %vm196 = vcmask 64512
    %s197 = scalar_lea.vmem [#allocation0], 425
    %198 = vst.msk [vmem:[%s197] sm:$0x3] %vm196, %v195
    %s199 = scalar_lea.vmem [#allocation0], 430
    %200 = vst.msk [vmem:[%s199] sm:$0x1c] %vm196, %v195
    %s201 = scalar_lea.vmem [#allocation0], 435
    %202 = vst.msk [vmem:[%s201] sm:$0xe0] %vm196, %v195
    %s203 = scalar_lea.vmem %s0, 168
    %v204 = vld [vmem:[%s203] sm:$0xff]
    %vm205 = vcmask 64512
    %s206 = scalar_lea.vmem [#allocation0], 448
    %207 = vst.msk [vmem:[%s206] sm:$0x7] %vm205, %v204
    %s208 = scalar_lea.vmem [#allocation0], 453
    %209 = vst.msk [vmem:[%s208] sm:$0x38] %vm205, %v204
    %s210 = scalar_lea.vmem [#allocation0], 458
    %211 = vst.msk [vmem:[%s210] sm:$0xc0] %vm205, %v204
    %s212 = scalar_lea.vmem %s0, 176
    %v213 = vld [vmem:[%s212] sm:$0xff]
    %vm214 = vcmask 64512
    %s215 = scalar_lea.vmem [#allocation0], 466
    %216 = vst.msk [vmem:[%s215] ss:$6 sm:$0x3] %vm214, %v213
    %s217 = scalar_lea.vmem [#allocation0], 471
    %218 = vst.msk [vmem:[%s217] sm:$0xc] %vm214, %v213
    %s219 = scalar_lea.vmem [#allocation0], 476
    %220 = vst.msk [vmem:[%s219] sm:$0x70] %vm214, %v213
    %s221 = scalar_lea.vmem [#allocation0], 481
    %222 = vst.msk [vmem:[%s221] sm:$0x80] %vm214, %v213
    %s223 = scalar_lea.vmem %s0, 184
    %v224 = vld [vmem:[%s223] sm:$0xff]
    %vm225 = vcmask 64512
    %s226 = scalar_lea.vmem [#allocation0], 489
    %227 = vst.msk [vmem:[%s226] sm:$0x3] %vm225, %v224
    %s228 = scalar_lea.vmem [#allocation0], 494
    %229 = vst.msk [vmem:[%s228] sm:$0x1c] %vm225, %v224
    %s230 = scalar_lea.vmem [#allocation0], 499
    %231 = vst.msk [vmem:[%s230] sm:$0xe0] %vm225, %v224
    %s233 = ssub.s32 16, 1
    %v234 = vld [vmem:[#allocation0] sm:%s233]
    %s236 = ssub.s32 16, 1
    %237 = vst [vmem:[%s1] sm:%s236] %v234
    %s238 = scalar_lea.vmem [#allocation0], 8
    %v239 = vld [vmem:[%s238] sm:%s233]
    %s241 = ssub.s32 16, 1
    %s242 = scalar_lea.vmem %s1, 4
    %243 = vst [vmem:[%s242] sm:%s241] %v239
    %s244 = scalar_lea.vmem [#allocation0], 16
    %v245 = vld [vmem:[%s244] sm:%s233]
    %s247 = ssub.s32 16, 1
    %s248 = scalar_lea.vmem %s1, 8
    %249 = vst [vmem:[%s248] sm:%s247] %v245
    %s250 = scalar_lea.vmem [#allocation0], 24
    %v251 = vld [vmem:[%s250] sm:%s233]
    %s253 = ssub.s32 16, 1
    %s254 = scalar_lea.vmem %s1, 12
    %255 = vst [vmem:[%s254] sm:%s253] %v251
    %s256 = scalar_lea.vmem [#allocation0], 32
    %v257 = vld [vmem:[%s256] sm:%s233]
    %s259 = ssub.s32 16, 1
    %s260 = scalar_lea.vmem %s1, 16
    %261 = vst [vmem:[%s260] sm:%s259] %v257
    %s262 = scalar_lea.vmem [#allocation0], 40
    %v263 = vld [vmem:[%s262] sm:%s233]
    %s265 = ssub.s32 16, 1
    %s266 = scalar_lea.vmem %s1, 20
    %267 = vst [vmem:[%s266] sm:%s265] %v263
    %s268 = scalar_lea.vmem [#allocation0], 48
    %v269 = vld [vmem:[%s268] sm:%s233]
    %s271 = ssub.s32 16, 1
    %s272 = scalar_lea.vmem %s1, 24
    %273 = vst [vmem:[%s272] sm:%s271] %v269
    %s274 = scalar_lea.vmem [#allocation0], 56
    %v275 = vld [vmem:[%s274] sm:%s233]
    %s277 = ssub.s32 16, 1
    %s278 = scalar_lea.vmem %s1, 28
    %279 = vst [vmem:[%s278] sm:%s277] %v275
    %s280 = scalar_lea.vmem [#allocation0], 64
    %v281 = vld [vmem:[%s280] sm:%s233]
    %s283 = ssub.s32 16, 1
    %s284 = scalar_lea.vmem %s1, 32
    %285 = vst [vmem:[%s284] sm:%s283] %v281
    %s286 = scalar_lea.vmem [#allocation0], 72
    %v287 = vld [vmem:[%s286] sm:%s233]
    %s289 = ssub.s32 16, 1
    %s290 = scalar_lea.vmem %s1, 36
    %291 = vst [vmem:[%s290] sm:%s289] %v287
    %s292 = scalar_lea.vmem [#allocation0], 80
    %v293 = vld [vmem:[%s292] sm:%s233]
    %s295 = ssub.s32 16, 1
    %s296 = scalar_lea.vmem %s1, 40
    %297 = vst [vmem:[%s296] sm:%s295] %v293
    %s298 = scalar_lea.vmem [#allocation0], 88
    %v299 = vld [vmem:[%s298] sm:%s233]
    %s301 = ssub.s32 16, 1
    %s302 = scalar_lea.vmem %s1, 44
    %303 = vst [vmem:[%s302] sm:%s301] %v299
    %s304 = scalar_lea.vmem [#allocation0], 96
    %v305 = vld [vmem:[%s304] sm:%s233]
    %s307 = ssub.s32 16, 1
    %s308 = scalar_lea.vmem %s1, 48
    %309 = vst [vmem:[%s308] sm:%s307] %v305
    %s310 = scalar_lea.vmem [#allocation0], 104
    %v311 = vld [vmem:[%s310] sm:%s233]
    %s313 = ssub.s32 16, 1
    %s314 = scalar_lea.vmem %s1, 52
    %315 = vst [vmem:[%s314] sm:%s313] %v311
    %s316 = scalar_lea.vmem [#allocation0], 112
    %v317 = vld [vmem:[%s316] sm:%s233]
    %s319 = ssub.s32 16, 1
    %s320 = scalar_lea.vmem %s1, 56
    %321 = vst [vmem:[%s320] sm:%s319] %v317
    %s322 = scalar_lea.vmem [#allocation0], 120
    %v323 = vld [vmem:[%s322] sm:%s233]
    %s325 = ssub.s32 16, 1
    %s326 = scalar_lea.vmem %s1, 60
    %327 = vst [vmem:[%s326] sm:%s325] %v323
    %s328 = scalar_lea.vmem [#allocation0], 128
    %v329 = vld [vmem:[%s328] sm:%s233]
    %s331 = ssub.s32 16, 1
    %s332 = scalar_lea.vmem %s1, 64
    %333 = vst [vmem:[%s332] sm:%s331] %v329
    %s334 = scalar_lea.vmem [#allocation0], 136
    %v335 = vld [vmem:[%s334] sm:%s233]
    %s337 = ssub.s32 16, 1
    %s338 = scalar_lea.vmem %s1, 68
    %339 = vst [vmem:[%s338] sm:%s337] %v335
    %s340 = scalar_lea.vmem [#allocation0], 144
    %v341 = vld [vmem:[%s340] sm:%s233]
    %s343 = ssub.s32 16, 1
    %s344 = scalar_lea.vmem %s1, 72
    %345 = vst [vmem:[%s344] sm:%s343] %v341
    %s346 = scalar_lea.vmem [#allocation0], 152
    %v347 = vld [vmem:[%s346] sm:%s233]
    %s349 = ssub.s32 16, 1
    %s350 = scalar_lea.vmem %s1, 76
    %351 = vst [vmem:[%s350] sm:%s349] %v347
    %s352 = scalar_lea.vmem [#allocation0], 160
    %v353 = vld [vmem:[%s352] sm:%s233]
    %s355 = ssub.s32 16, 1
    %s356 = scalar_lea.vmem %s1, 80
    %357 = vst [vmem:[%s356] sm:%s355] %v353
    %s358 = scalar_lea.vmem [#allocation0], 168
    %v359 = vld [vmem:[%s358] sm:%s233]
    %s361 = ssub.s32 16, 1
    %s362 = scalar_lea.vmem %s1, 84
    %363 = vst [vmem:[%s362] sm:%s361] %v359
    %s364 = scalar_lea.vmem [#allocation0], 176
    %v365 = vld [vmem:[%s364] sm:%s233]
    %s367 = ssub.s32 16, 1
    %s368 = scalar_lea.vmem %s1, 88
    %369 = vst [vmem:[%s368] sm:%s367] %v365
    %s370 = scalar_lea.vmem [#allocation0], 184
    %v371 = vld [vmem:[%s370] sm:%s233]
    %s373 = ssub.s32 16, 1
    %s374 = scalar_lea.vmem %s1, 92
    %375 = vst [vmem:[%s374] sm:%s373] %v371
    %s376 = scalar_lea.vmem [#allocation0], 192
    %v377 = vld [vmem:[%s376] sm:%s233]
    %s379 = ssub.s32 16, 1
    %s380 = scalar_lea.vmem %s1, 96
    %381 = vst [vmem:[%s380] sm:%s379] %v377
    %s382 = scalar_lea.vmem [#allocation0], 200
    %v383 = vld [vmem:[%s382] sm:%s233]
    %s385 = ssub.s32 16, 1
    %s386 = scalar_lea.vmem %s1, 100
    %387 = vst [vmem:[%s386] sm:%s385] %v383
    %s388 = scalar_lea.vmem [#allocation0], 208
    %v389 = vld [vmem:[%s388] sm:%s233]
    %s391 = ssub.s32 16, 1
    %s392 = scalar_lea.vmem %s1, 104
    %393 = vst [vmem:[%s392] sm:%s391] %v389
    %s394 = scalar_lea.vmem [#allocation0], 216
    %v395 = vld [vmem:[%s394] sm:%s233]
    %s397 = ssub.s32 16, 1
    %s398 = scalar_lea.vmem %s1, 108
    %399 = vst [vmem:[%s398] sm:%s397] %v395
    %s400 = scalar_lea.vmem [#allocation0], 224
    %v401 = vld [vmem:[%s400] sm:%s233]
    %s403 = ssub.s32 16, 1
    %s404 = scalar_lea.vmem %s1, 112
    %405 = vst [vmem:[%s404] sm:%s403] %v401
    %s406 = scalar_lea.vmem [#allocation0], 232
    %v407 = vld [vmem:[%s406] sm:%s233]
    %s409 = ssub.s32 16, 1
    %s410 = scalar_lea.vmem %s1, 116
    %411 = vst [vmem:[%s410] sm:%s409] %v407
    %s412 = scalar_lea.vmem [#allocation0], 240
    %v413 = vld [vmem:[%s412] sm:%s233]
    %s415 = ssub.s32 16, 1
    %s416 = scalar_lea.vmem %s1, 120
    %417 = vst [vmem:[%s416] sm:%s415] %v413
    %s418 = scalar_lea.vmem [#allocation0], 248
    %v419 = vld [vmem:[%s418] sm:%s233]
    %s421 = ssub.s32 16, 1
    %s422 = scalar_lea.vmem %s1, 124
    %423 = vst [vmem:[%s422] sm:%s421] %v419
    %s424 = scalar_lea.vmem [#allocation0], 256
    %v425 = vld [vmem:[%s424] sm:%s233]
    %s427 = ssub.s32 16, 1
    %s428 = scalar_lea.vmem %s1, 128
    %429 = vst [vmem:[%s428] sm:%s427] %v425
    %s430 = scalar_lea.vmem [#allocation0], 264
    %v431 = vld [vmem:[%s430] sm:%s233]
    %s433 = ssub.s32 16, 1
    %s434 = scalar_lea.vmem %s1, 132
    %435 = vst [vmem:[%s434] sm:%s433] %v431
    %s436 = scalar_lea.vmem [#allocation0], 272
    %v437 = vld [vmem:[%s436] sm:%s233]
    %s439 = ssub.s32 16, 1
    %s440 = scalar_lea.vmem %s1, 136
    %441 = vst [vmem:[%s440] sm:%s439] %v437
    %s442 = scalar_lea.vmem [#allocation0], 280
    %v443 = vld [vmem:[%s442] sm:%s233]
    %s445 = ssub.s32 16, 1
    %s446 = scalar_lea.vmem %s1, 140
    %447 = vst [vmem:[%s446] sm:%s445] %v443
    %s448 = scalar_lea.vmem [#allocation0], 288
    %v449 = vld [vmem:[%s448] sm:%s233]
    %s451 = ssub.s32 16, 1
    %s452 = scalar_lea.vmem %s1, 144
    %453 = vst [vmem:[%s452] sm:%s451] %v449
    %s454 = scalar_lea.vmem [#allocation0], 296
    %v455 = vld [vmem:[%s454] sm:%s233]
    %s457 = ssub.s32 16, 1
    %s458 = scalar_lea.vmem %s1, 148
    %459 = vst [vmem:[%s458] sm:%s457] %v455
    %s460 = scalar_lea.vmem [#allocation0], 304
    %v461 = vld [vmem:[%s460] sm:%s233]
    %s463 = ssub.s32 16, 1
    %s464 = scalar_lea.vmem %s1, 152
    %465 = vst [vmem:[%s464] sm:%s463] %v461
    %s466 = scalar_lea.vmem [#allocation0], 312
    %v467 = vld [vmem:[%s466] sm:%s233]
    %s469 = ssub.s32 16, 1
    %s470 = scalar_lea.vmem %s1, 156
    %471 = vst [vmem:[%s470] sm:%s469] %v467
    %s472 = scalar_lea.vmem [#allocation0], 320
    %v473 = vld [vmem:[%s472] sm:%s233]
    %s475 = ssub.s32 16, 1
    %s476 = scalar_lea.vmem %s1, 160
    %477 = vst [vmem:[%s476] sm:%s475] %v473
    %s478 = scalar_lea.vmem [#allocation0], 328
    %v479 = vld [vmem:[%s478] sm:%s233]
    %s481 = ssub.s32 16, 1
    %s482 = scalar_lea.vmem %s1, 164
    %483 = vst [vmem:[%s482] sm:%s481] %v479
    %s484 = scalar_lea.vmem [#allocation0], 336
    %v485 = vld [vmem:[%s484] sm:%s233]
    %s487 = ssub.s32 16, 1
    %s488 = scalar_lea.vmem %s1, 168
    %489 = vst [vmem:[%s488] sm:%s487] %v485
    %s490 = scalar_lea.vmem [#allocation0], 344
    %v491 = vld [vmem:[%s490] sm:%s233]
    %s493 = ssub.s32 16, 1
    %s494 = scalar_lea.vmem %s1, 172
    %495 = vst [vmem:[%s494] sm:%s493] %v491
    %s496 = scalar_lea.vmem [#allocation0], 352
    %v497 = vld [vmem:[%s496] sm:%s233]
    %s499 = ssub.s32 16, 1
    %s500 = scalar_lea.vmem %s1, 176
    %501 = vst [vmem:[%s500] sm:%s499] %v497
    %s502 = scalar_lea.vmem [#allocation0], 360
    %v503 = vld [vmem:[%s502] sm:%s233]
    %s505 = ssub.s32 16, 1
    %s506 = scalar_lea.vmem %s1, 180
    %507 = vst [vmem:[%s506] sm:%s505] %v503
    %s508 = scalar_lea.vmem [#allocation0], 368
    %v509 = vld [vmem:[%s508] sm:%s233]
    %s511 = ssub.s32 16, 1
    %s512 = scalar_lea.vmem %s1, 184
    %513 = vst [vmem:[%s512] sm:%s511] %v509
    %s514 = scalar_lea.vmem [#allocation0], 376
    %v515 = vld [vmem:[%s514] sm:%s233]
    %s517 = ssub.s32 16, 1
    %s518 = scalar_lea.vmem %s1, 188
    %519 = vst [vmem:[%s518] sm:%s517] %v515
    %s520 = scalar_lea.vmem [#allocation0], 384
    %v521 = vld [vmem:[%s520] sm:%s233]
    %s523 = ssub.s32 16, 1
    %s524 = scalar_lea.vmem %s1, 192
    %525 = vst [vmem:[%s524] sm:%s523] %v521
    %s526 = scalar_lea.vmem [#allocation0], 392
    %v527 = vld [vmem:[%s526] sm:%s233]
    %s529 = ssub.s32 16, 1
    %s530 = scalar_lea.vmem %s1, 196
    %531 = vst [vmem:[%s530] sm:%s529] %v527
    %s532 = scalar_lea.vmem [#allocation0], 400
    %v533 = vld [vmem:[%s532] sm:%s233]
    %s535 = ssub.s32 16, 1
    %s536 = scalar_lea.vmem %s1, 200
    %537 = vst [vmem:[%s536] sm:%s535] %v533
    %s538 = scalar_lea.vmem [#allocation0], 408
    %v539 = vld [vmem:[%s538] sm:%s233]
    %s541 = ssub.s32 16, 1
    %s542 = scalar_lea.vmem %s1, 204
    %543 = vst [vmem:[%s542] sm:%s541] %v539
    %s544 = scalar_lea.vmem [#allocation0], 416
    %v545 = vld [vmem:[%s544] sm:%s233]
    %s547 = ssub.s32 16, 1
    %s548 = scalar_lea.vmem %s1, 208
    %549 = vst [vmem:[%s548] sm:%s547] %v545
    %s550 = scalar_lea.vmem [#allocation0], 424
    %v551 = vld [vmem:[%s550] sm:%s233]
    %s553 = ssub.s32 16, 1
    %s554 = scalar_lea.vmem %s1, 212
    %555 = vst [vmem:[%s554] sm:%s553] %v551
    %s556 = scalar_lea.vmem [#allocation0], 432
    %v557 = vld [vmem:[%s556] sm:%s233]
    %s559 = ssub.s32 16, 1
    %s560 = scalar_lea.vmem %s1, 216
    %561 = vst [vmem:[%s560] sm:%s559] %v557
    %s562 = scalar_lea.vmem [#allocation0], 440
    %v563 = vld [vmem:[%s562] sm:%s233]
    %s565 = ssub.s32 16, 1
    %s566 = scalar_lea.vmem %s1, 220
    %567 = vst [vmem:[%s566] sm:%s565] %v563
    %s568 = scalar_lea.vmem [#allocation0], 448
    %v569 = vld [vmem:[%s568] sm:%s233]
    %s571 = ssub.s32 16, 1
    %s572 = scalar_lea.vmem %s1, 224
    %573 = vst [vmem:[%s572] sm:%s571] %v569
    %s574 = scalar_lea.vmem [#allocation0], 456
    %v575 = vld [vmem:[%s574] sm:%s233]
    %s577 = ssub.s32 16, 1
    %s578 = scalar_lea.vmem %s1, 228
    %579 = vst [vmem:[%s578] sm:%s577] %v575
    %s580 = scalar_lea.vmem [#allocation0], 464
    %v581 = vld [vmem:[%s580] sm:%s233]
    %s583 = ssub.s32 16, 1
    %s584 = scalar_lea.vmem %s1, 232
    %585 = vst [vmem:[%s584] sm:%s583] %v581
    %s586 = scalar_lea.vmem [#allocation0], 472
    %v587 = vld [vmem:[%s586] sm:%s233]
    %s589 = ssub.s32 16, 1
    %s590 = scalar_lea.vmem %s1, 236
    %591 = vst [vmem:[%s590] sm:%s589] %v587
    %s592 = scalar_lea.vmem [#allocation0], 480
    %v593 = vld [vmem:[%s592] sm:%s233]
    %s595 = ssub.s32 16, 1
    %s596 = scalar_lea.vmem %s1, 240
    %597 = vst [vmem:[%s596] sm:%s595] %v593
    %s598 = scalar_lea.vmem [#allocation0], 488
    %v599 = vld [vmem:[%s598] sm:%s233]
    %s601 = ssub.s32 16, 1
    %s602 = scalar_lea.vmem %s1, 244
    %603 = vst [vmem:[%s602] sm:%s601] %v599
    %s604 = scalar_lea.vmem [#allocation0], 496
    %v605 = vld [vmem:[%s604] sm:%s233]
    %s607 = ssub.s32 16, 1
    %s608 = scalar_lea.vmem %s1, 248
    %609 = vst [vmem:[%s608] sm:%s607] %v605
    %s610 = scalar_lea.vmem [#allocation0], 504
    %v611 = vld [vmem:[%s610] sm:%s233]
    %s613 = ssub.s32 16, 1
    %s614 = scalar_lea.vmem %s1, 252
    %615 = vst [vmem:[%s614] sm:%s613] %v611

</llo_original>
